<compile_context>
chip_gen: v7x
topology: tpu7x:2x2x1
jax: 0.10.0
libtpu: 0.0.40
codegen_flags: <defaults>
</compile_context>

<pallas_src>
import functools

import numpy as np
import jax
import jax.numpy as jnp
from jax import lax
from jax.experimental import pallas as pl
from jax.experimental.pallas import tpu as pltpu

LANE = 128


def _round_up(x, m):
    return (x + m - 1) // m * m


# ---------------------------------------------------------------------------
# Pallas kernel: im2col GEMM + fused Fixup epilogue
# ---------------------------------------------------------------------------
def _conv_gemm_kernel(*refs, apply_relu, has_residual):
    """out = relu?( dot(patches, W_scaled) + bias [+ residual] )."""
    if has_residual:
        patches_ref, w_ref, bias_ref, res_ref, out_ref = refs
    else:
        patches_ref, w_ref, bias_ref, out_ref = refs
        res_ref = None

    acc = jnp.dot(patches_ref[...], w_ref[...],
                  preferred_element_type=jnp.float32)
    acc = acc + bias_ref[...]
    if res_ref is not None:
        acc = acc + res_ref[...]
    if apply_relu:
        acc = jnp.maximum(acc, 0.0)
    out_ref[...] = acc


# ---------------------------------------------------------------------------
# Wrapper: padding / im2col / weight prep (pure data-movement glue)
# ---------------------------------------------------------------------------
def conv3x3_fixup(x, w_oihw, *, stride, bias_vec, scale, residual=None,
                  apply_relu=True, tile_m=256):
    """Fused 3x3 conv (im2col GEMM) + per-channel bias + optional residual + ReLU.

    x        : (N, H, W, Cin) f32.  Any scalar pre-bias must already be folded
               into x by the caller (before zero padding).
    w_oihw   : (Cout, Cin, 3, 3) f32 weights.
    bias_vec : (Cout,) f32 additive bias.
    scale    : scalar, folded into the weights.
    residual : optional (N*Ho*Wo, Cres) with Cres <= Cout, added to the first
               Cres output channels before ReLU (covers both the plain identity
               and the zero-concat downsample identity).
    """
    N, H, W, Cin = x.shape
    Cout = w_oihw.shape[0]
    Ho = (H + 2 - 3) // stride + 1
    Wo = (W + 2 - 3) // stride + 1
    M = N * Ho * Wo
    K = 9 * Cin
    c_pad = _round_up(Cout, LANE)

    # im2col (plain-JAX data movement).
    # TODO(synk): replace the HBM im2col expansion with in-kernel shifted
    # matmuls (9 taps against a VMEM-resident padded activation tile) to cut
    # activation traffic ~9x; kept as wrapper glue here for simplicity.
    xp = jnp.pad(x, ((0, 0), (1, 1), (1, 1), (0, 0)))
    cols = [xp[:, kh:kh + (Ho - 1) * stride + 1:stride,
               kw:kw + (Wo - 1) * stride + 1:stride, :]
            for kh in range(3) for kw in range(3)]
    patches = jnp.stack(cols, axis=3).reshape(M, K)

    # Weights: OIHW -> [(kh*3+kw)*Cin + ci, co], scale folded in, lane-padded.
    w_mat = (jnp.transpose(w_oihw, (2, 3, 1, 0)).reshape(K, Cout)
             * jnp.asarray(scale, jnp.float32).reshape(()))
    w_mat = jnp.pad(w_mat, ((0, 0), (0, c_pad - Cout))).astype(jnp.bfloat16)

    bias = jnp.pad(jnp.asarray(bias_vec, jnp.float32).reshape(1, Cout),
                   ((0, 0), (0, c_pad - Cout)))

    # Row tiling (M axis) -- pad M to a tile multiple; bf16 halves patch DMA.
    tile_m = min(tile_m, _round_up(M, 8))
    m_pad = _round_up(M, tile_m)
    patches = jnp.pad(patches, ((0, m_pad - M), (0, 0))).astype(jnp.bfloat16)

    has_residual = residual is not None
    operands = [patches, w_mat, bias]
    in_specs = [
        pl.BlockSpec((tile_m, K), lambda i: (i, 0)),      # patches tile
        pl.BlockSpec((K, c_pad), lambda i: (0, 0)),       # weights (resident)
        pl.BlockSpec((1, c_pad), lambda i: (0, 0)),       # bias (resident)
    ]
    if has_residual:
        c_res = residual.shape[1]
        res = jnp.pad(residual.astype(jnp.float32),
                      ((0, m_pad - M), (0, c_pad - c_res)))
        operands.append(res)
        in_specs.append(pl.BlockSpec((tile_m, c_pad), lambda i: (i, 0)))

    grid = (m_pad // tile_m,)
    flops = 2 * m_pad * K * c_pad
    bytes_accessed = (m_pad * K * 2 + K * c_pad * 2 + c_pad * 4
                      + m_pad * c_pad * 4 * (2 if has_residual else 1))

    kernel = functools.partial(_conv_gemm_kernel, apply_relu=apply_relu,
                               has_residual=has_residual)
    out = pl.pallas_call(
        kernel,
        out_shape=jax.ShapeDtypeStruct((m_pad, c_pad), jnp.float32),
        grid=grid,
        in_specs=in_specs,
        out_specs=pl.BlockSpec((tile_m, c_pad), lambda i: (i, 0)),
        compiler_params=pltpu.CompilerParams(
            dimension_semantics=("parallel",),
            vmem_limit_bytes=32 * 1024 * 1024),
        cost_estimate=pl.CostEstimate(flops=flops, transcendentals=0,
                                      bytes_accessed=bytes_accessed),
    )(*operands)
    return out[:M, :Cout].reshape(N, Ho, Wo, Cout)


# ---------------------------------------------------------------------------
# FixupBasicBlock forward
# ---------------------------------------------------------------------------
@functools.partial(jax.jit, static_argnames=("stride", "has_downsample"))
def fixup_basic_block(x_nhwc, p, *, stride=1, has_downsample=False):
    """Forward of FixupBasicBlock (NHWC activations)."""
    cout = p['conv1_w'].shape[0]
    xb = x_nhwc + p['bias1a']        # pre-bias folded BEFORE zero padding

    # out = relu(conv1(x + bias1a) + bias1b)         (no residual operand)
    out = conv3x3_fixup(
        xb, p['conv1_w'], stride=stride,
        bias_vec=jnp.broadcast_to(
            jnp.asarray(p['bias1b'], jnp.float32).reshape(()), (cout,)),
        scale=1.0, residual=None, apply_relu=True)
    N, Ho, Wo, _ = out.shape

    if has_downsample:
        # TODO(synk): downsample module not specified in the source; assumed
        # nn.AvgPool2d(1, stride) (pure subsampling) + zero channel concat as
        # in the standard Fixup CIFAR ResNet.  The zero concat is realized by
        # the lane padding inside conv3x3_fixup (no zero tensor materialized).
        ident = xb[:, ::stride, ::stride, :]
    else:
        ident = x_nhwc                              # Cin == Cout here
    residual = ident.reshape(N * Ho * Wo, ident.shape[-1])

    # out = relu(conv2(out + bias2a) * scale + bias2b + identity)
    out = conv3x3_fixup(
        out + p['bias2a'], p['conv2_w'], stride=1,
        bias_vec=jnp.broadcast_to(
            jnp.asarray(p['bias2b'], jnp.float32).reshape(()), (cout,)),
        scale=p['scale'], residual=residual, apply_relu=True)
    return out


# ---------------------------------------------------------------------------
# Pure-JAX reference (mirrors the PyTorch forward) for verification
# ---------------------------------------------------------------------------
def ref_block(x, p, *, stride, has_downsample):
    def conv(x, w, s):
        return lax.conv_general_dilated(
            x, jnp.transpose(w, (2, 3, 1, 0)), (s, s), ((1, 1), (1, 1)),
            dimension_numbers=('NHWC', 'HWIO', 'NHWC'),
            precision=lax.Precision.HIGHEST)

    identity = x
    out = conv(x + p['bias1a'], p['conv1_w'], stride)
    out = jax.nn.relu(out + p['bias1b'])
    out = conv(out + p['bias2a'], p['conv2_w'], 1)
    out = out * p['scale'] + p['bias2b']
    if has_downsample:
        identity = (x + p['bias1a'])[:, ::stride, ::stride, :]
        identity = jnp.concatenate([identity, jnp.zeros_like(identity)],
                                   axis=-1)
    return jax.nn.relu(out + identity)


# ---------------------------------------------------------------------------
# Deterministic parameters (Fixup-style shapes; nonzero so the path is exercised)
# ---------------------------------------------------------------------------
def init_block_params(key, inplanes, planes, num_layers=3):
    k1, k2 = jax.random.split(key)
    std1 = float(np.sqrt(2.0 / (planes * 9)) * num_layers ** (-0.5))
    return {
        'bias1a': jnp.full((1,), 0.01, jnp.float32),
        'conv1_w': jax.random.normal(k1, (planes, inplanes, 3, 3),
                                     jnp.float32) * std1,
        'bias1b': jnp.full((1,), -0.01, jnp.float32),
        'bias2a': jnp.full((1,), 0.02, jnp.float32),
        # Fixup init zeroes conv2; use small nonzero values so the full
        # compute path (scale, bias2b, residual) is exercised.
        'conv2_w': jax.random.normal(k2, (planes, planes, 3, 3),
                                     jnp.float32) * 0.05,
        'scale': jnp.full((1,), 1.0, jnp.float32),
        'bias2b': jnp.full((1,), 0.005, jnp.float32),
    }


# ---------------------------------------------------------------------------
if __name__ == "__main__":
    key = jax.random.PRNGKey(0)
    kx, kp1, kp2 = jax.random.split(key, 3)

    # PyTorch-style NCHW input, transposed once to NHWC at the boundary.
    x_nchw = jax.random.normal(kx, (2, 16, 16, 16), jnp.float32)
    x_nhwc = jnp.transpose(x_nchw, (0, 2, 3, 1))

    # Case 1: stride-1 block, no downsample (16 -> 16 channels).
    p1 = init_block_params(kp1, 16, 16)
    out1 = jax.block_until_ready(
        fixup_basic_block(x_nhwc, p1, stride=1, has_downsample=False))
    ref1 = jax.block_until_ready(
        ref_block(x_nhwc, p1, stride=1, has_downsample=False))
    np.testing.assert_allclose(np.asarray(out1), np.asarray(ref1),
                               rtol=2e-2, atol=2e-2)

    # Case 2: stride-2 block with downsample (16 -> 32 channels).
    p2 = init_block_params(kp2, 16, 32)
    out2 = jax.block_until_ready(
        fixup_basic_block(x_nhwc, p2, stride=2, has_downsample=True))
    ref2 = jax.block_until_ready(
        ref_block(x_nhwc, p2, stride=2, has_downsample=True))
    np.testing.assert_allclose(np.asarray(out2), np.asarray(ref2),
                               rtol=2e-2, atol=2e-2)

    print("KERNEL_OK")
</pallas_src>

<mosaic_0001>
module attributes {stable_mosaic.version = 11 : i64} {
  func.func @_conv_gemm_kernel(%arg0: i32, %arg1: memref<256x144xbf16, #tpu.memory_space<vmem>>, %arg2: memref<144x128xbf16, #tpu.memory_space<vmem>>, %arg3: memref<1x128xf32, #tpu.memory_space<vmem>>, %arg4: memref<256x128xf32, #tpu.memory_space<vmem>>) attributes {dimension_semantics = [#tpu.dimension_semantics<parallel>], iteration_bounds = array<i64: 2>, scalar_prefetch = 0 : i64, scratch_operands = 0 : i64, tpu.core_type = #tpu.core_type<tc>, window_params = [{transform_indices = @transform_0, window_bounds = array<i64: 256, 144>}, {pipeline_mode = #tpu.pipeline_mode<synchronous>, transform_indices = @transform_1, window_bounds = array<i64: 144, 128>}, {pipeline_mode = #tpu.pipeline_mode<synchronous>, transform_indices = @transform_2, window_bounds = array<i64: 1, 128>}, {transform_indices = @transform_3, window_bounds = array<i64: 256, 128>}]} {
    %c0 = arith.constant 0 : index
    %c0_0 = arith.constant 0 : index
    %0 = vector.load %arg1[%c0, %c0_0] : memref<256x144xbf16, #tpu.memory_space<vmem>>, vector<256x144xbf16>
    %c0_1 = arith.constant 0 : index
    %c0_2 = arith.constant 0 : index
    %1 = vector.load %arg2[%c0_1, %c0_2] : memref<144x128xbf16, #tpu.memory_space<vmem>>, vector<144x128xbf16>
    %cst = arith.constant dense<0.000000e+00> : vector<256x128xf32>
    %2 = tpu.matmul %0, %1, %cst {dimension_numbers = #tpu.dot_dimension_numbers<[1], [0], [0], [1], [0, 0, 1, 1], [], []>} : vector<256x144xbf16>, vector<144x128xbf16>, vector<256x128xf32> -> vector<256x128xf32>
    %c0_3 = arith.constant 0 : index
    %c0_4 = arith.constant 0 : index
    %3 = vector.load %arg3[%c0_3, %c0_4] : memref<1x128xf32, #tpu.memory_space<vmem>>, vector<1x128xf32>
    %4 = vector.broadcast %3 : vector<1x128xf32> to vector<256x128xf32>
    %5 = arith.addf %2, %4 : vector<256x128xf32>
    %cst_5 = arith.constant 0.000000e+00 : f32
    %6 = vector.broadcast %cst_5 : f32 to vector<256x128xf32>
    %7 = arith.maximumf %5, %6 : vector<256x128xf32>
    %c0_6 = arith.constant 0 : index
    %c0_7 = arith.constant 0 : index
    %8 = vector.load %arg4[%c0_6, %c0_7] : memref<256x128xf32, #tpu.memory_space<vmem>>, vector<256x128xf32>
    tpu.vector_store %arg4[%c0_6, %c0_7], %7 {strides = array<i32>} : memref<256x128xf32, #tpu.memory_space<vmem>>, vector<256x128xf32>,
    return
  }
  func.func @transform_0(%arg0: i32) -> (i32, i32) {
    %c0_i32 = arith.constant 0 : i32
    %c0_i32_0 = arith.constant 0 : i32
    return %arg0, %c0_i32 : i32, i32
  }
  func.func @transform_1(%arg0: i32) -> (i32, i32) {
    %c0_i32 = arith.constant 0 : i32
    %c0_i32_0 = arith.constant 0 : i32
    %c0_i32_1 = arith.constant 0 : i32
    return %c0_i32, %c0_i32_0 : i32, i32
  }
  func.func @transform_2(%arg0: i32) -> (i32, i32) {
    %c0_i32 = arith.constant 0 : i32
    %c0_i32_0 = arith.constant 0 : i32
    %c0_i32_1 = arith.constant 0 : i32
    return %c0_i32, %c0_i32_0 : i32, i32
  }
  func.func @transform_3(%arg0: i32) -> (i32, i32) {
    %c0_i32 = arith.constant 0 : i32
    %c0_i32_0 = arith.constant 0 : i32
    return %arg0, %c0_i32 : i32, i32
  }
}

module attributes {stable_mosaic.version = 11 : i64} {
  func.func @_conv_gemm_kernel(%arg0: i32, %arg1: memref<256x144xbf16, #tpu.memory_space<vmem>>, %arg2: memref<144x128xbf16, #tpu.memory_space<vmem>>, %arg3: memref<1x128xf32, #tpu.memory_space<vmem>>, %arg4: memref<256x128xf32, #tpu.memory_space<vmem>>, %arg5: memref<256x128xf32, #tpu.memory_space<vmem>>) attributes {dimension_semantics = [#tpu.dimension_semantics<parallel>], iteration_bounds = array<i64: 2>, scalar_prefetch = 0 : i64, scratch_operands = 0 : i64, tpu.core_type = #tpu.core_type<tc>, window_params = [{transform_indices = @transform_0, window_bounds = array<i64: 256, 144>}, {pipeline_mode = #tpu.pipeline_mode<synchronous>, transform_indices = @transform_1, window_bounds = array<i64: 144, 128>}, {pipeline_mode = #tpu.pipeline_mode<synchronous>, transform_indices = @transform_2, window_bounds = array<i64: 1, 128>}, {transform_indices = @transform_3, window_bounds = array<i64: 256, 128>}, {transform_indices = @transform_4, window_bounds = array<i64: 256, 128>}]} {
    %c0 = arith.constant 0 : index
    %c0_0 = arith.constant 0 : index
    %0 = vector.load %arg1[%c0, %c0_0] : memref<256x144xbf16, #tpu.memory_space<vmem>>, vector<256x144xbf16>
    %c0_1 = arith.constant 0 : index
    %c0_2 = arith.constant 0 : index
    %1 = vector.load %arg2[%c0_1, %c0_2] : memref<144x128xbf16, #tpu.memory_space<vmem>>, vector<144x128xbf16>
    %cst = arith.constant dense<0.000000e+00> : vector<256x128xf32>
    %2 = tpu.matmul %0, %1, %cst {dimension_numbers = #tpu.dot_dimension_numbers<[1], [0], [0], [1], [0, 0, 1, 1], [], []>} : vector<256x144xbf16>, vector<144x128xbf16>, vector<256x128xf32> -> vector<256x128xf32>
    %c0_3 = arith.constant 0 : index
    %c0_4 = arith.constant 0 : index
    %3 = vector.load %arg3[%c0_3, %c0_4] : memref<1x128xf32, #tpu.memory_space<vmem>>, vector<1x128xf32>
    %4 = vector.broadcast %3 : vector<1x128xf32> to vector<256x128xf32>
    %5 = arith.addf %2, %4 : vector<256x128xf32>
    %c0_5 = arith.constant 0 : index
    %c0_6 = arith.constant 0 : index
    %6 = vector.load %arg4[%c0_5, %c0_6] : memref<256x128xf32, #tpu.memory_space<vmem>>, vector<256x128xf32>
    %7 = arith.addf %5, %6 : vector<256x128xf32>
    %cst_7 = arith.constant 0.000000e+00 : f32
    %8 = vector.broadcast %cst_7 : f32 to vector<256x128xf32>
    %9 = arith.maximumf %7, %8 : vector<256x128xf32>
    %c0_8 = arith.constant 0 : index
    %c0_9 = arith.constant 0 : index
    %10 = vector.load %arg5[%c0_8, %c0_9] : memref<256x128xf32, #tpu.memory_space<vmem>>, vector<256x128xf32>
    tpu.vector_store %arg5[%c0_8, %c0_9], %9 {strides = array<i32>} : memref<256x128xf32, #tpu.memory_space<vmem>>, vector<256x128xf32>,
    return
  }
  func.func @transform_0(%arg0: i32) -> (i32, i32) {
    %c0_i32 = arith.constant 0 : i32
    %c0_i32_0 = arith.constant 0 : i32
    return %arg0, %c0_i32 : i32, i32
  }
  func.func @transform_1(%arg0: i32) -> (i32, i32) {
    %c0_i32 = arith.constant 0 : i32
    %c0_i32_0 = arith.constant 0 : i32
    %c0_i32_1 = arith.constant 0 : i32
    return %c0_i32, %c0_i32_0 : i32, i32
  }
  func.func @transform_2(%arg0: i32) -> (i32, i32) {
    %c0_i32 = arith.constant 0 : i32
    %c0_i32_0 = arith.constant 0 : i32
    %c0_i32_1 = arith.constant 0 : i32
    return %c0_i32, %c0_i32_0 : i32, i32
  }
  func.func @transform_3(%arg0: i32) -> (i32, i32) {
    %c0_i32 = arith.constant 0 : i32
    %c0_i32_0 = arith.constant 0 : i32
    return %arg0, %c0_i32 : i32, i32
  }
  func.func @transform_4(%arg0: i32) -> (i32, i32) {
    %c0_i32 = arith.constant 0 : i32
    %c0_i32_0 = arith.constant 0 : i32
    return %arg0, %c0_i32 : i32, i32
  }
}

</mosaic_0001>

<llo_original>
// kernel: fixup_basic_block.2
$region0: #{fixup_basic_block.2}
  #allocation0 [shape = 'u32[]', space=smem, size = 0x4, offset = 0x4, fixed_abs, tag = 'smem constant byte address 0x4 - core index']
  #allocation1 [shape = 'u32[144,128]{1,0:T(1,128)}', space=vmem, size = 0x12000, scoped, tag = 'internal scratch']
  %s0 = inlined_call_operand.vmem [shape: bf16[512,144], index: 0, kind: input, shape index: {}]
  %s1 = inlined_call_operand.vmem [shape: bf16[144,128], index: 1, kind: input, shape index: {}]
  %s2 = inlined_call_operand.vmem [shape: f32[1,128], index: 2, kind: input, shape index: {}]
  %s3 = inlined_call_operand.vmem [shape: f32[512,128], index: 3, kind: output, shape index: {}]
  %s4 = sld [smem:[#allocation0]]
  $region45: #{fixup_basic_block.2} parent=0
    _
  %s6 = ssub.s32 1, %s4
  %s7 = scalar_select 0, %s6, %s4
  loop: start=0, step=1, limit=4
  $region2: #{fixup_basic_block.2} parent=0 // loop_pre_header
    _
  $region3: #{fixup_basic_block.2} parent=0 // loop_header
    %s9 = sphi 0, %s13
    %p10 = scmp.ge.s32.totalorder %s9, 4
    %s19 = sphi 0, %s21
    %s22 = sphi 0, %s19
    %s23 = sphi 0, %s22
    %s39 = sphi 0, %s23
    %s43 = sphi 0, %s43
    %s45 = sphi 0, %s43
    %s46 = sphi 0, %s45
    %s60 = sphi 0, %s46
    %s64 = sphi 0, %s64
    %s66 = sphi 0, %s64
    %s67 = sphi 0, %s66
    %s81 = sphi 0, %s67
    %s87 = sphi 0, %s89
    %s90 = sphi 0, %s87
    %s91 = sphi 0, %s90
    %s107 = sphi 0, %s91
  $region4: #{fixup_basic_block.2} parent=0 // loop_header_branch
    %12 = sbr.rel (%p10) target = $region8
  $region5: #{fixup_basic_block.2} parent=0 // loop_body
    %s14 = ssub.s32 %s9, 1
    %s15 = ssub.s32 %s9, 2
    %s16 = sadd.s32 %s9, 1
    %s17 = ssub.s32 %s9, %s16
    %p18 = scmp.eq.s32.totalorder %s17, 0
    %s20 = sadd.s32 %s19, 1
    %s21 = scalar_select %p18, %s19, %s20
    %p24 = pneg %p18
    %p25 = scmp.eq.s32.totalorder %s9, 1
    %p26 = por %p24, %p25
    %p27 = scmp.ne.s32.totalorder %s19, %s22
    %p28 = scmp.eq.s32.totalorder %s9, 0
    %p29 = por %p27, %p28
    %p30 = scmp.ne.s32.totalorder %s19, %s22
    %p31 = scmp.eq.s32.totalorder %s14, 1
    %p32 = por %p30, %p31
    %p33 = scmp.ne.s32.totalorder %s22, %s23
    %p34 = scmp.eq.s32.totalorder %s14, 0
    %p35 = por %p33, %p34
    %p36 = scmp.ne.s32.totalorder %s22, %s23
    %p37 = scmp.eq.s32.totalorder %s15, 1
    %p38 = por %p36, %p37
    %p40 = scmp.ne.s32.totalorder %s23, %s39
    %p41 = scmp.eq.s32.totalorder %s15, 0
    %p42 = por %p40, %p41
    %s44 = sadd.s32 %s43, 1
    %p47 = scmp.eq.s32.totalorder %s9, 1
    %p48 = scmp.ne.s32.totalorder %s43, %s45
    %p49 = scmp.eq.s32.totalorder %s9, 0
    %p50 = por %p48, %p49
    %p51 = scmp.ne.s32.totalorder %s43, %s45
    %p52 = scmp.eq.s32.totalorder %s14, 1
    %p53 = por %p51, %p52
    %p54 = scmp.ne.s32.totalorder %s45, %s46
    %p55 = scmp.eq.s32.totalorder %s14, 0
    %p56 = por %p54, %p55
    %p57 = scmp.ne.s32.totalorder %s45, %s46
    %p58 = scmp.eq.s32.totalorder %s15, 1
    %p59 = por %p57, %p58
    %p61 = scmp.ne.s32.totalorder %s46, %s60
    %p62 = scmp.eq.s32.totalorder %s15, 0
    %p63 = por %p61, %p62
    %s65 = sadd.s32 %s64, 1
    %p68 = scmp.eq.s32.totalorder %s9, 1
    %p69 = scmp.ne.s32.totalorder %s64, %s66
    %p70 = scmp.eq.s32.totalorder %s9, 0
    %p71 = por %p69, %p70
    %p72 = scmp.ne.s32.totalorder %s64, %s66
    %p73 = scmp.eq.s32.totalorder %s14, 1
    %p74 = por %p72, %p73
    %p75 = scmp.ne.s32.totalorder %s66, %s67
    %p76 = scmp.eq.s32.totalorder %s14, 0
    %p77 = por %p75, %p76
    %p78 = scmp.ne.s32.totalorder %s66, %s67
    %p79 = scmp.eq.s32.totalorder %s15, 1
    %p80 = por %p78, %p79
    %p82 = scmp.ne.s32.totalorder %s67, %s81
    %p83 = scmp.eq.s32.totalorder %s15, 0
    %p84 = por %p82, %p83
    %s85 = ssub.s32 %s9, %s16
    %p86 = scmp.eq.s32.totalorder %s85, 0
    %s88 = sadd.s32 %s87, 1
    %s89 = scalar_select %p86, %s87, %s88
    %p92 = pneg %p86
    %p93 = scmp.eq.s32.totalorder %s9, 1
    %p94 = por %p92, %p93
    %p95 = scmp.ne.s32.totalorder %s87, %s90
    %p96 = scmp.eq.s32.totalorder %s9, 0
    %p97 = por %p95, %p96
    %p98 = scmp.ne.s32.totalorder %s87, %s90
    %p99 = scmp.eq.s32.totalorder %s14, 1
    %p100 = por %p98, %p99
    %p101 = scmp.ne.s32.totalorder %s90, %s91
    %p102 = scmp.eq.s32.totalorder %s14, 0
    %p103 = por %p101, %p102
    %p104 = scmp.ne.s32.totalorder %s90, %s91
    %p105 = scmp.eq.s32.totalorder %s15, 1
    %p106 = por %p104, %p105
    %p108 = scmp.ne.s32.totalorder %s91, %s107
    %p109 = scmp.eq.s32.totalorder %s15, 0
    %p110 = por %p108, %p109
    %p111 = scmp.le.s32.totalorder 1, %s9
    %p112 = scmp.lt.s32.totalorder %s9, 3
    %p113 = pnand %p111, %p112
    %p114 = pneg %p113
    // Predicated region
    $region9: #{fixup_basic_block.2} parent=5 // pred_check
      _
    $region10: #{fixup_basic_block.2} parent=5 // pred_check_branch
      %116 = sbr.rel (%p113) target = $region12
    $region11: #{fixup_basic_block.2} parent=5 // pred_region
      %s117 = ssub.s32 %s9, 1
      // Predicated region
      $region13: #{fixup_basic_block.2} parent=11 // pred_check
        %p118 = pneg %p56
      $region14: #{fixup_basic_block.2} parent=11 // pred_check_branch
        %120 = sbr.rel (%p118) target = $region16
      $region15: #{fixup_basic_block.2} parent=11 // pred_region
        _
      $region16: #{fixup_basic_block.2} parent=11 // pred_fallthru
        _
      // Predicated region
      $region17: #{fixup_basic_block.2} parent=11 // pred_check
        %p121 = pneg %p77
      $region18: #{fixup_basic_block.2} parent=11 // pred_check_branch
        %123 = sbr.rel (%p121) target = $region20
      $region19: #{fixup_basic_block.2} parent=11 // pred_region
        _
      $region20: #{fixup_basic_block.2} parent=11 // pred_fallthru
        _
    $region12: #{fixup_basic_block.2} parent=5 // pred_fallthru
      _
    %p124 = scmp.lt.s32.totalorder %s9, 2
    // Predicated region
    $region21: #{fixup_basic_block.2} parent=5 // pred_check
      %p125 = pneg %p124
    $region22: #{fixup_basic_block.2} parent=5 // pred_check_branch
      %127 = sbr.rel (%p125) target = $region24
    $region23: #{fixup_basic_block.2} parent=5 // pred_region
      // Predicated region
      $region25: #{fixup_basic_block.2} parent=23 // pred_check
        %p128 = pneg %p29
      $region26: #{fixup_basic_block.2} parent=23 // pred_check_branch
        %130 = sbr.rel (%p128) target = $region28
      $region27: #{fixup_basic_block.2} parent=23 // pred_region
        %s131 = smul.u32 32, %s9
        %p132 = scmp.lt.s32.totalorder %s131, 63
        %s133 = scalar_select %p132, %s131, 63
        %s134 = smul.addr %s133, 2
        %s135 = smul.addr %s134, 4
        %s136 = scalar_lea.vmem %s0, %s135
        %s137 = smul.u32 32, %s9
      $region28: #{fixup_basic_block.2} parent=23 // pred_fallthru
        _
    $region24: #{fixup_basic_block.2} parent=5 // pred_fallthru
      _
    %p138 = scmp.le.s32.totalorder 1, %s9
    %p139 = scmp.lt.s32.totalorder %s9, 3
    %p140 = pnand %p138, %p139
    %p141 = pneg %p140
    // Predicated region
    $region29: #{fixup_basic_block.2} parent=5 // pred_check
      _
    $region30: #{fixup_basic_block.2} parent=5 // pred_check_branch
      %143 = sbr.rel (%p140) target = $region32
    $region31: #{fixup_basic_block.2} parent=5 // pred_region
      %s144 = ssub.s32 %s9, 1
      %s145 = smul.u32 32, %s14
      %p146 = scmp.lt.s32.totalorder %s145, 63
      %s147 = scalar_select %p146, %s145, 63
      %s148 = smul.addr %s147, 2
      %s149 = smul.addr %s148, 4
      %s150 = scalar_lea.vmem %s0, %s149
      %p151 = pneg %p35
      %p152 = pneg %p32
      %p153 = pneg %p56
      %p154 = pneg %p53
      %p155 = pneg %p77
      %p156 = pneg %p74
      %p157 = pneg %p103
      %p158 = pneg %p100
      %s159 = smul.u32 32, %s14
      %p160 = scmp.lt.s32.totalorder %s159, 63
      %s161 = scalar_select %p160, %s159, 63
      %s162 = smul.addr %s161, 8
      %s163 = scalar_lea.vmem %s3, %s162
      %s164 = smul.u32 32, %s14
      %p165 = scmp.lt.s32.totalorder %s164, 63
      %s166 = scalar_select %p165, %s164, 63
      %s167 = smul.addr %s166, 2
      %s168 = smul.addr %s167, 4
      %s169 = scalar_lea.vmem %s0, %s168
      %s170 = smul.u32 32, %s14
      %s171 = smul.u32 32, %s14
      %p172 = scmp.lt.s32.totalorder %s171, 63
      %s173 = scalar_select %p172, %s171, 63
      %s174 = smul.addr %s173, 8
      %s175 = scalar_lea.vmem %s3, %s174
      %s176 = smul.u32 32, %s14
      %v178 = vld [vmem:[%s169] sm:$0xff]
      %v179 = vld [vmem:[%s169 + $0x8] sm:$0xff]
      %v180 = vld [vmem:[%s169 + $0x10] sm:$0xff]
      %v181 = vld [vmem:[%s169 + $0x18] sm:$0xff]
      %v182 = vld [vmem:[%s169 + $0x20] sm:$0xff]
      %v183 = vld [vmem:[%s169 + $0x28] sm:$0xff]
      %v184 = vld [vmem:[%s169 + $0x30] sm:$0xff]
      %v185 = vld [vmem:[%s169 + $0x38] sm:$0xff]
      %v186 = vld [vmem:[%s169 + $0x40] sm:$0xff]
      %v187 = vld [vmem:[%s169 + $0x48] sm:$0xff]
      %v188 = vld [vmem:[%s169 + $0x50] sm:$0xff]
      %v189 = vld [vmem:[%s169 + $0x58] sm:$0xff]
      %v190 = vld [vmem:[%s169 + $0x60] sm:$0xff]
      %v191 = vld [vmem:[%s169 + $0x68] sm:$0xff]
      %v192 = vld [vmem:[%s169 + $0x70] sm:$0xff]
      %v193 = vld [vmem:[%s169 + $0x78] sm:$0xff]
      %v194 = vld [vmem:[%s169 + $0x80] sm:$0xff]
      %v195 = vld [vmem:[%s169 + $0x88] sm:$0xff]
      %v196 = vld [vmem:[%s169 + $0x90] sm:$0xff]
      %v197 = vld [vmem:[%s169 + $0x98] sm:$0xff]
      %v198 = vld [vmem:[%s169 + $0xa0] sm:$0xff]
      %v199 = vld [vmem:[%s169 + $0xa8] sm:$0xff]
      %v200 = vld [vmem:[%s169 + $0xb0] sm:$0xff]
      %v201 = vld [vmem:[%s169 + $0xb8] sm:$0xff]
      %v202 = vld [vmem:[%s169 + $0xc0] sm:$0xff]
      %v203 = vld [vmem:[%s169 + $0xc8] sm:$0xff]
      %v204 = vld [vmem:[%s169 + $0xd0] sm:$0xff]
      %v205 = vld [vmem:[%s169 + $0xd8] sm:$0xff]
      %v206 = vld [vmem:[%s169 + $0xe0] sm:$0xff]
      %v207 = vld [vmem:[%s169 + $0xe8] sm:$0xff]
      %v208 = vld [vmem:[%s169 + $0xf0] sm:$0xff]
      %v209 = vld [vmem:[%s169 + $0xf8] sm:$0xff]
      %v210 = vld [vmem:[%s1] sm:$0xf]
      %v211 = vld [vmem:[%s1 + $0x4] sm:$0xf]
      %v212 = vld [vmem:[%s1 + $0x8] sm:$0xf]
      %v213 = vld [vmem:[%s1 + $0xc] sm:$0xf]
      %v214 = vld [vmem:[%s1 + $0x10] sm:$0xf]
      %v215 = vld [vmem:[%s1 + $0x14] sm:$0xf]
      %v216 = vld [vmem:[%s1 + $0x18] sm:$0xf]
      %v217 = vld [vmem:[%s1 + $0x1c] sm:$0xf]
      %v218 = vld [vmem:[%s1 + $0x20] sm:$0xf]
      %v219 = vld [vmem:[%s1 + $0x24] sm:$0xf]
      %v220 = vld [vmem:[%s1 + $0x28] sm:$0xf]
      %v221 = vld [vmem:[%s1 + $0x2c] sm:$0xf]
      %v222 = vld [vmem:[%s1 + $0x30] sm:$0xf]
      %v223 = vld [vmem:[%s1 + $0x34] sm:$0xf]
      %v224 = vld [vmem:[%s1 + $0x38] sm:$0xf]
      %v225 = vld [vmem:[%s1 + $0x3c] sm:$0xf]
      %v226 = vld [vmem:[%s1 + $0x40] sm:$0xf]
      %v227 = vld [vmem:[%s1 + $0x44] sm:$0xf]
      %v228 = vld [vmem:[%s2] sm:$0x1]
      %v230 = vlaneseq
      %v231 = vshrl.u32 %v230, 7
      %v232 = vsub.s32 0, %v231
      %v233 = vrot.slane %v228, %v232
      %v267 = vunpack.c.l.b16 %v178
      %v268 = vunpack.c.h.b16 %v178
      %v269 = vunpack.c.l.b16 %v179
      %v270 = vunpack.c.h.b16 %v179
      %v271 = vunpack.c.l.b16 %v180
      %v272 = vunpack.c.h.b16 %v180
      %v273 = vunpack.c.l.b16 %v181
      %v274 = vunpack.c.h.b16 %v181
      %v275 = vunpack.c.l.b16 %v182
      %v276 = vunpack.c.h.b16 %v182
      %v277 = vunpack.c.l.b16 %v183
      %v278 = vunpack.c.h.b16 %v183
      %v279 = vunpack.c.l.b16 %v184
      %v280 = vunpack.c.h.b16 %v184
      %v281 = vunpack.c.l.b16 %v185
      %v282 = vunpack.c.h.b16 %v185
      %v283 = vunpack.c.l.b16 %v186
      %v284 = vunpack.c.h.b16 %v186
      %v285 = vunpack.c.l.b16 %v187
      %v286 = vunpack.c.h.b16 %v187
      %v287 = vunpack.c.l.b16 %v188
      %v288 = vunpack.c.h.b16 %v188
      %v289 = vunpack.c.l.b16 %v189
      %v290 = vunpack.c.h.b16 %v189
      %v291 = vunpack.c.l.b16 %v190
      %v292 = vunpack.c.h.b16 %v190
      %v293 = vunpack.c.l.b16 %v191
      %v294 = vunpack.c.h.b16 %v191
      %v295 = vunpack.c.l.b16 %v192
      %v296 = vunpack.c.h.b16 %v192
      %v297 = vunpack.c.l.b16 %v193
      %v298 = vunpack.c.h.b16 %v193
      %v299 = vunpack.c.l.b16 %v194
      %v300 = vunpack.c.h.b16 %v194
      %v301 = vunpack.c.l.b16 %v195
      %v302 = vunpack.c.h.b16 %v195
      %v303 = vunpack.c.l.b16 %v196
      %v304 = vunpack.c.h.b16 %v196
      %v305 = vunpack.c.l.b16 %v197
      %v306 = vunpack.c.h.b16 %v197
      %v307 = vunpack.c.l.b16 %v198
      %v308 = vunpack.c.h.b16 %v198
      %v309 = vunpack.c.l.b16 %v199
      %v310 = vunpack.c.h.b16 %v199
      %v311 = vunpack.c.l.b16 %v200
      %v312 = vunpack.c.h.b16 %v200
      %v313 = vunpack.c.l.b16 %v201
      %v314 = vunpack.c.h.b16 %v201
      %v315 = vunpack.c.l.b16 %v202
      %v316 = vunpack.c.h.b16 %v202
      %v317 = vunpack.c.l.b16 %v203
      %v318 = vunpack.c.h.b16 %v203
      %v319 = vunpack.c.l.b16 %v204
      %v320 = vunpack.c.h.b16 %v204
      %v321 = vunpack.c.l.b16 %v205
      %v322 = vunpack.c.h.b16 %v205
      %v323 = vunpack.c.l.b16 %v206
      %v324 = vunpack.c.h.b16 %v206
      %v325 = vunpack.c.l.b16 %v207
      %v326 = vunpack.c.h.b16 %v207
      %v327 = vunpack.c.l.b16 %v208
      %v328 = vunpack.c.h.b16 %v208
      %v329 = vunpack.c.l.b16 %v209
      %v330 = vunpack.c.h.b16 %v209
      %v331 = vpack.c.b16 %v269, %v267
      %v332 = vpack.c.b16 %v270, %v268
      %v333 = vpack.c.b16 %v273, %v271
      %v334 = vpack.c.b16 %v274, %v272
      %v335 = vpack.c.b16 %v277, %v275
      %v336 = vpack.c.b16 %v278, %v276
      %v337 = vpack.c.b16 %v281, %v279
      %v338 = vpack.c.b16 %v282, %v280
      %v339 = vpack.c.b16 %v285, %v283
      %v340 = vpack.c.b16 %v286, %v284
      %v341 = vpack.c.b16 %v289, %v287
      %v342 = vpack.c.b16 %v290, %v288
      %v343 = vpack.c.b16 %v293, %v291
      %v344 = vpack.c.b16 %v294, %v292
      %v345 = vpack.c.b16 %v297, %v295
      %v346 = vpack.c.b16 %v298, %v296
      %v347 = vpack.c.b16 %v301, %v299
      %v348 = vpack.c.b16 %v302, %v300
      %v349 = vpack.c.b16 %v305, %v303
      %v350 = vpack.c.b16 %v306, %v304
      %v351 = vpack.c.b16 %v309, %v307
      %v352 = vpack.c.b16 %v310, %v308
      %v353 = vpack.c.b16 %v313, %v311
      %v354 = vpack.c.b16 %v314, %v312
      %v355 = vpack.c.b16 %v317, %v315
      %v356 = vpack.c.b16 %v318, %v316
      %v357 = vpack.c.b16 %v321, %v319
      %v358 = vpack.c.b16 %v322, %v320
      %v359 = vpack.c.b16 %v325, %v323
      %v360 = vpack.c.b16 %v326, %v324
      %v361 = vpack.c.b16 %v329, %v327
      %v362 = vpack.c.b16 %v330, %v328
      %v397 = vunpack.c.l.b16 %v210
      %v398 = vunpack.c.l.b16 %v211
      %v399 = vunpack.c.l.b16 %v212
      %v400 = vunpack.c.l.b16 %v213
      %v401 = vunpack.c.l.b16 %v214
      %v402 = vunpack.c.l.b16 %v215
      %v403 = vunpack.c.l.b16 %v216
      %v404 = vunpack.c.l.b16 %v217
      %v405 = vunpack.c.l.b16 %v218
      %v406 = vunpack.c.l.b16 %v219
      %v407 = vunpack.c.l.b16 %v220
      %v408 = vunpack.c.l.b16 %v221
      %v409 = vunpack.c.l.b16 %v222
      %v410 = vunpack.c.l.b16 %v223
      %v411 = vunpack.c.l.b16 %v224
      %v412 = vunpack.c.l.b16 %v225
      %v413 = vunpack.c.l.b16 %v226
      %v414 = vunpack.c.l.b16 %v227
      %v415 = vpack.c.b16 %v398, %v397
      %v416 = vpack.c.b16 %v400, %v399
      %v417 = vpack.c.b16 %v402, %v401
      %v418 = vpack.c.b16 %v404, %v403
      %v419 = vpack.c.b16 %v406, %v405
      %v420 = vpack.c.b16 %v408, %v407
      %v421 = vpack.c.b16 %v410, %v409
      %v422 = vpack.c.b16 %v412, %v411
      %v423 = vpack.c.b16 %v414, %v413
      %vm433 = vcmask 130048
      %v435 = vsel %vm433, %v332, 0
      %v438 = vsel %vm433, %v334, 0
      %v441 = vsel %vm433, %v336, 0
      %v444 = vsel %vm433, %v338, 0
      %v447 = vsel %vm433, %v340, 0
      %v450 = vsel %vm433, %v342, 0
      %v453 = vsel %vm433, %v344, 0
      %v456 = vsel %vm433, %v346, 0
      %v459 = vsel %vm433, %v348, 0
      %v462 = vsel %vm433, %v350, 0
      %v465 = vsel %vm433, %v352, 0
      %v468 = vsel %vm433, %v354, 0
      %v471 = vsel %vm433, %v356, 0
      %v474 = vsel %vm433, %v358, 0
      %v477 = vsel %vm433, %v360, 0
      %v480 = vsel %vm433, %v362, 0
      %482 = vmatprep.subr.bf16.mxu0 0
      %483 = vmatpush1.bf16.msra.mxu0 %v415
      %484 = vmatprep.subr.bf16.mxu0 0
      %485 = vmatpush1.bf16.msra.mxu0 %v416
      %486 = vmatprep.subr.bf16.mxu0 0
      %487 = vmatpush1.bf16.msra.mxu0 %v417
      %488 = vmatprep.subr.bf16.mxu0 0
      %489 = vmatpush1.bf16.msra.mxu0 %v418
      %490 = vmatprep.subr.bf16.mxu0 0
      %491 = vmatpush1.bf16.msra.mxu0 %v419
      %492 = vmatprep.subr.bf16.mxu0 0
      %493 = vmatpush1.bf16.msra.mxu0 %v420
      %494 = vmatprep.subr.bf16.mxu0 0
      %495 = vmatpush1.bf16.msra.mxu0 %v421
      %496 = vmatprep.subr.bf16.mxu0 0
      %497 = vmatpush1.bf16.msra.mxu0 %v422
      %498 = vmatprep.subr.bf16.mxu0 0
      %499 = vmatpush1.bf16.msra.mxu0 %v423
      %500 = vmatprep.subr.bf16.mxu0 0
      %501 = vmatpush1.bf16.msra.mxu0 0
      %502 = vmatprep.subr.bf16.mxu0 0
      %503 = vmatpush1.bf16.msra.mxu0 0
      %504 = vmatprep.subr.bf16.mxu0 0
      %505 = vmatpush1.bf16.msra.mxu0 0
      %506 = vmatprep.subr.bf16.mxu0 0
      %507 = vmatpush1.bf16.msra.mxu0 0
      %508 = vmatprep.subr.bf16.mxu0 0
      %509 = vmatpush1.bf16.msra.mxu0 0
      %510 = vmatprep.subr.bf16.mxu0 0
      %511 = vmatpush1.bf16.msra.mxu0 0
      %512 = vmatprep.subr.bf16.mxu0 0
      %513 = vmatpush1.bf16.msra.mxu0 0
      %514 = vmatprep.mubr.bf16.mxu0 %v435
      %515 = vmatmul.mubr.bf16.gmra.mrb[0].mxu0 %v331
      %v516 = vpop.f32.mrb[0].mxu0
      %v517 = vadd.f32 %v233, %v516
      %v518 = vpop.f32.mrb[0].mxu0
      %v519 = vpop.f32.mrb[0].mxu0
      %v520 = vadd.f32 %v233, %v519
      %v521 = vpop.f32.mrb[0].mxu0
      %522 = vmatprep.mubr.bf16.mxu0 %v438
      %523 = vmatmul.mubr.bf16.gmra.mrb[0].mxu0 %v333
      %v524 = vpop.f32.mrb[0].mxu0
      %v525 = vadd.f32 %v233, %v524
      %v526 = vpop.f32.mrb[0].mxu0
      %v527 = vpop.f32.mrb[0].mxu0
      %v528 = vadd.f32 %v233, %v527
      %v529 = vpop.f32.mrb[0].mxu0
      %530 = vmatprep.mubr.bf16.mxu0 %v441
      %531 = vmatmul.mubr.bf16.gmra.mrb[0].mxu0 %v335
      %v532 = vpop.f32.mrb[0].mxu0
      %v533 = vadd.f32 %v233, %v532
      %v534 = vpop.f32.mrb[0].mxu0
      %v535 = vpop.f32.mrb[0].mxu0
      %v536 = vadd.f32 %v233, %v535
      %v537 = vpop.f32.mrb[0].mxu0
      %538 = vmatprep.mubr.bf16.mxu0 %v444
      %539 = vmatmul.mubr.bf16.gmra.mrb[0].mxu0 %v337
      %v540 = vpop.f32.mrb[0].mxu0
      %v541 = vadd.f32 %v233, %v540
      %v542 = vpop.f32.mrb[0].mxu0
      %v543 = vpop.f32.mrb[0].mxu0
      %v544 = vadd.f32 %v233, %v543
      %v545 = vpop.f32.mrb[0].mxu0
      %546 = vmatprep.mubr.bf16.mxu0 %v447
      %547 = vmatmul.mubr.bf16.gmra.mrb[0].mxu0 %v339
      %v548 = vpop.f32.mrb[0].mxu0
      %v549 = vadd.f32 %v233, %v548
      %v550 = vpop.f32.mrb[0].mxu0
      %v551 = vpop.f32.mrb[0].mxu0
      %v552 = vadd.f32 %v233, %v551
      %v553 = vpop.f32.mrb[0].mxu0
      %554 = vmatprep.mubr.bf16.mxu0 %v450
      %555 = vmatmul.mubr.bf16.gmra.mrb[0].mxu0 %v341
      %v556 = vpop.f32.mrb[0].mxu0
      %v557 = vadd.f32 %v233, %v556
      %v558 = vpop.f32.mrb[0].mxu0
      %v559 = vpop.f32.mrb[0].mxu0
      %v560 = vadd.f32 %v233, %v559
      %v561 = vpop.f32.mrb[0].mxu0
      %562 = vmatprep.mubr.bf16.mxu0 %v453
      %563 = vmatmul.mubr.bf16.gmra.mrb[0].mxu0 %v343
      %v564 = vpop.f32.mrb[0].mxu0
      %v565 = vadd.f32 %v233, %v564
      %v566 = vpop.f32.mrb[0].mxu0
      %v567 = vpop.f32.mrb[0].mxu0
      %v568 = vadd.f32 %v233, %v567
      %v569 = vpop.f32.mrb[0].mxu0
      %570 = vmatprep.mubr.bf16.mxu0 %v456
      %571 = vmatmul.mubr.bf16.gmra.mrb[0].mxu0 %v345
      %v572 = vpop.f32.mrb[0].mxu0
      %v573 = vadd.f32 %v233, %v572
      %v574 = vpop.f32.mrb[0].mxu0
      %v575 = vpop.f32.mrb[0].mxu0
      %v576 = vadd.f32 %v233, %v575
      %v577 = vpop.f32.mrb[0].mxu0
      %578 = vmatprep.mubr.bf16.mxu0 %v459
      %579 = vmatmul.mubr.bf16.gmra.mrb[0].mxu0 %v347
      %v580 = vpop.f32.mrb[0].mxu0
      %v581 = vadd.f32 %v233, %v580
      %v582 = vpop.f32.mrb[0].mxu0
      %v583 = vpop.f32.mrb[0].mxu0
      %v584 = vadd.f32 %v233, %v583
      %v585 = vpop.f32.mrb[0].mxu0
      %586 = vmatprep.mubr.bf16.mxu0 %v462
      %587 = vmatmul.mubr.bf16.gmra.mrb[0].mxu0 %v349
      %v588 = vpop.f32.mrb[0].mxu0
      %v589 = vadd.f32 %v233, %v588
      %v590 = vpop.f32.mrb[0].mxu0
      %v591 = vpop.f32.mrb[0].mxu0
      %v592 = vadd.f32 %v233, %v591
      %v593 = vpop.f32.mrb[0].mxu0
      %594 = vmatprep.mubr.bf16.mxu0 %v465
      %595 = vmatmul.mubr.bf16.gmra.mrb[0].mxu0 %v351
      %v596 = vpop.f32.mrb[0].mxu0
      %v597 = vadd.f32 %v233, %v596
      %v598 = vpop.f32.mrb[0].mxu0
      %v599 = vpop.f32.mrb[0].mxu0
      %v600 = vadd.f32 %v233, %v599
      %v601 = vpop.f32.mrb[0].mxu0
      %602 = vmatprep.mubr.bf16.mxu0 %v468
      %603 = vmatmul.mubr.bf16.gmra.mrb[0].mxu0 %v353
      %v604 = vpop.f32.mrb[0].mxu0
      %v605 = vadd.f32 %v233, %v604
      %v606 = vpop.f32.mrb[0].mxu0
      %v607 = vpop.f32.mrb[0].mxu0
      %v608 = vadd.f32 %v233, %v607
      %v609 = vpop.f32.mrb[0].mxu0
      %610 = vmatprep.mubr.bf16.mxu0 %v471
      %611 = vmatmul.mubr.bf16.gmra.mrb[0].mxu0 %v355
      %v612 = vpop.f32.mrb[0].mxu0
      %v613 = vadd.f32 %v233, %v612
      %v614 = vpop.f32.mrb[0].mxu0
      %v615 = vpop.f32.mrb[0].mxu0
      %v616 = vadd.f32 %v233, %v615
      %v617 = vpop.f32.mrb[0].mxu0
      %618 = vmatprep.mubr.bf16.mxu0 %v474
      %619 = vmatmul.mubr.bf16.gmra.mrb[0].mxu0 %v357
      %v620 = vpop.f32.mrb[0].mxu0
      %v621 = vadd.f32 %v233, %v620
      %v622 = vpop.f32.mrb[0].mxu0
      %v623 = vpop.f32.mrb[0].mxu0
      %v624 = vadd.f32 %v233, %v623
      %v625 = vpop.f32.mrb[0].mxu0
      %626 = vmatprep.mubr.bf16.mxu0 %v477
      %627 = vmatmul.mubr.bf16.gmra.mrb[0].mxu0 %v359
      %v628 = vpop.f32.mrb[0].mxu0
      %v629 = vadd.f32 %v233, %v628
      %v630 = vpop.f32.mrb[0].mxu0
      %v631 = vpop.f32.mrb[0].mxu0
      %v632 = vadd.f32 %v233, %v631
      %v633 = vpop.f32.mrb[0].mxu0
      %634 = vmatprep.mubr.bf16.mxu0 %v480
      %635 = vmatmul.mubr.bf16.gmra.mrb[0].mxu0 %v361
      %v636 = vpop.f32.mrb[0].mxu0
      %v637 = vadd.f32 %v233, %v636
      %v638 = vpop.f32.mrb[0].mxu0
      %v639 = vpop.f32.mrb[0].mxu0
      %v640 = vadd.f32 %v233, %v639
      %v641 = vpop.f32.mrb[0].mxu0
      %642 = vdwg.mxu0
      %v643 = vmax.f32 %v517, 0.0
      %v644 = vmax.f32 %v520, 0.0
      %v645 = vmax.f32 %v525, 0.0
      %v646 = vmax.f32 %v528, 0.0
      %v647 = vmax.f32 %v533, 0.0
      %v648 = vmax.f32 %v536, 0.0
      %v649 = vmax.f32 %v541, 0.0
      %v650 = vmax.f32 %v544, 0.0
      %v651 = vmax.f32 %v549, 0.0
      %v652 = vmax.f32 %v552, 0.0
      %v653 = vmax.f32 %v557, 0.0
      %v654 = vmax.f32 %v560, 0.0
      %v655 = vmax.f32 %v565, 0.0
      %v656 = vmax.f32 %v568, 0.0
      %v657 = vmax.f32 %v573, 0.0
      %v658 = vmax.f32 %v576, 0.0
      %v659 = vmax.f32 %v581, 0.0
      %v660 = vmax.f32 %v584, 0.0
      %v661 = vmax.f32 %v589, 0.0
      %v662 = vmax.f32 %v592, 0.0
      %v663 = vmax.f32 %v597, 0.0
      %v664 = vmax.f32 %v600, 0.0
      %v665 = vmax.f32 %v605, 0.0
      %v666 = vmax.f32 %v608, 0.0
      %v667 = vmax.f32 %v613, 0.0
      %v668 = vmax.f32 %v616, 0.0
      %v669 = vmax.f32 %v621, 0.0
      %v670 = vmax.f32 %v624, 0.0
      %v671 = vmax.f32 %v629, 0.0
      %v672 = vmax.f32 %v632, 0.0
      %v673 = vmax.f32 %v637, 0.0
      %v674 = vmax.f32 %v640, 0.0
      %675 = vst [vmem:[%s175] sm:$0xff] %v643
      %676 = vst [vmem:[%s175 + $0x8] sm:$0xff] %v644
      %677 = vst [vmem:[%s175 + $0x10] sm:$0xff] %v645
      %678 = vst [vmem:[%s175 + $0x18] sm:$0xff] %v646
      %679 = vst [vmem:[%s175 + $0x20] sm:$0xff] %v647
      %680 = vst [vmem:[%s175 + $0x28] sm:$0xff] %v648
      %681 = vst [vmem:[%s175 + $0x30] sm:$0xff] %v649
      %682 = vst [vmem:[%s175 + $0x38] sm:$0xff] %v650
      %683 = vst [vmem:[%s175 + $0x40] sm:$0xff] %v651
      %684 = vst [vmem:[%s175 + $0x48] sm:$0xff] %v652
      %685 = vst [vmem:[%s175 + $0x50] sm:$0xff] %v653
      %686 = vst [vmem:[%s175 + $0x58] sm:$0xff] %v654
      %687 = vst [vmem:[%s175 + $0x60] sm:$0xff] %v655
      %688 = vst [vmem:[%s175 + $0x68] sm:$0xff] %v656
      %689 = vst [vmem:[%s175 + $0x70] sm:$0xff] %v657
      %690 = vst [vmem:[%s175 + $0x78] sm:$0xff] %v658
      %691 = vst [vmem:[%s175 + $0x80] sm:$0xff] %v659
      %692 = vst [vmem:[%s175 + $0x88] sm:$0xff] %v660
      %693 = vst [vmem:[%s175 + $0x90] sm:$0xff] %v661
      %694 = vst [vmem:[%s175 + $0x98] sm:$0xff] %v662
      %695 = vst [vmem:[%s175 + $0xa0] sm:$0xff] %v663
      %696 = vst [vmem:[%s175 + $0xa8] sm:$0xff] %v664
      %697 = vst [vmem:[%s175 + $0xb0] sm:$0xff] %v665
      %698 = vst [vmem:[%s175 + $0xb8] sm:$0xff] %v666
      %699 = vst [vmem:[%s175 + $0xc0] sm:$0xff] %v667
      %700 = vst [vmem:[%s175 + $0xc8] sm:$0xff] %v668
      %701 = vst [vmem:[%s175 + $0xd0] sm:$0xff] %v669
      %702 = vst [vmem:[%s175 + $0xd8] sm:$0xff] %v670
      %703 = vst [vmem:[%s175 + $0xe0] sm:$0xff] %v671
      %704 = vst [vmem:[%s175 + $0xe8] sm:$0xff] %v672
      %705 = vst [vmem:[%s175 + $0xf0] sm:$0xff] %v673
      %706 = vst [vmem:[%s175 + $0xf8] sm:$0xff] %v674
      %s707 = smul.u32 32, %s14
      %p708 = scmp.lt.s32.totalorder %s707, 63
      %s709 = scalar_select %p708, %s707, 63
      %s710 = smul.addr %s709, 8
      %s711 = scalar_lea.vmem %s3, %s710
      // Predicated region
      $region33: #{fixup_basic_block.2} parent=31 // pred_check
        %p712 = pneg %p100
      $region34: #{fixup_basic_block.2} parent=31 // pred_check_branch
        %714 = sbr.rel (%p712) target = $region36
      $region35: #{fixup_basic_block.2} parent=31 // pred_region
        %s715 = smul.u32 32, %s14
      $region36: #{fixup_basic_block.2} parent=31 // pred_fallthru
        _
    $region32: #{fixup_basic_block.2} parent=5 // pred_fallthru
      _
    %p716 = scmp.le.s32.totalorder 2, %s9
    // Predicated region
    $region37: #{fixup_basic_block.2} parent=5 // pred_check
      %p717 = pneg %p716
    $region38: #{fixup_basic_block.2} parent=5 // pred_check_branch
      %719 = sbr.rel (%p717) target = $region40
    $region39: #{fixup_basic_block.2} parent=5 // pred_region
      %s720 = ssub.s32 %s9, 2
      // Predicated region
      $region41: #{fixup_basic_block.2} parent=39 // pred_check
        %p721 = pneg %p106
      $region42: #{fixup_basic_block.2} parent=39 // pred_check_branch
        %723 = sbr.rel (%p721) target = $region44
      $region43: #{fixup_basic_block.2} parent=39 // pred_region
        %s724 = smul.u32 32, %s15
        %p725 = scmp.lt.s32.totalorder %s724, 63
        %s726 = scalar_select %p725, %s724, 63
        %s727 = smul.addr %s726, 8
        %s728 = scalar_lea.vmem %s3, %s727
      $region44: #{fixup_basic_block.2} parent=39 // pred_fallthru
        _
    $region40: #{fixup_basic_block.2} parent=5 // pred_fallthru
      _
  $region6: #{fixup_basic_block.2} parent=0 // loop_footer
    %s13 = sadd.s32 1, %s9
  $region7: #{fixup_basic_block.2} parent=0 // loop_footer_branch
    %8 = sbr.rel target = $region3
  $region8: #{fixup_basic_block.2} parent=0 // loop_exit
    _

// kernel: fixup_basic_block.3
$region0: #{fixup_basic_block.3}
  #allocation0 [shape = 'u32[]', space=smem, size = 0x4, offset = 0x4, fixed_abs, tag = 'smem constant byte address 0x4 - core index']
  #allocation1 [shape = 'u32[144,128]{1,0:T(1,128)}', space=vmem, size = 0x12000, scoped, tag = 'internal scratch']
  %s0 = inlined_call_operand.vmem [shape: bf16[512,144], index: 0, kind: input, shape index: {}]
  %s1 = inlined_call_operand.vmem [shape: bf16[144,128], index: 1, kind: input, shape index: {}]
  %s2 = inlined_call_operand.vmem [shape: f32[1,128], index: 2, kind: input, shape index: {}]
  %s3 = inlined_call_operand.vmem [shape: f32[512,128], index: 3, kind: input, shape index: {}]
  %s4 = inlined_call_operand.hbm [shape: f32[512,128], index: 4, kind: output, shape index: {}]
  %s5 = sld [smem:[#allocation0]]
  $region49: #{fixup_basic_block.3} parent=0
    _
  %s7 = ssub.s32 1, %s5
  %s8 = scalar_select 0, %s7, %s5
  $region1: #{fixup_basic_block.3} parent=0
    #allocation2 [shape = 'u8[262144]{0}', space=vmem, size = 0x40000, scoped, tag = 'output window, operand 0']
    #allocation3 [shape = 's32[2]{0}', space=sflag, size = 0x8, scoped, tag = 'scoped memory for fixup_basic_block.3']
    %9 = vsyncpa [#allocation3], 0
    %s10 = scalar_lea.sflag [#allocation3], 1
    %11 = vsyncpa %s10, 0
    loop: start=0, step=1, limit=4
    $region2: #{fixup_basic_block.3} parent=1 // loop_pre_header
      _
    $region3: #{fixup_basic_block.3} parent=1 // loop_header
      %s13 = sphi 0, %s17
      %p14 = scmp.ge.s32.totalorder %s13, 4
      %s23 = sphi 0, %s25
      %s26 = sphi 0, %s23
      %s27 = sphi 0, %s26
      %s43 = sphi 0, %s27
      %s47 = sphi 0, %s47
      %s49 = sphi 0, %s47
      %s50 = sphi 0, %s49
      %s64 = sphi 0, %s50
      %s68 = sphi 0, %s68
      %s70 = sphi 0, %s68
      %s71 = sphi 0, %s70
      %s85 = sphi 0, %s71
      %s91 = sphi 0, %s93
      %s94 = sphi 0, %s91
      %s95 = sphi 0, %s94
      %s111 = sphi 0, %s95
      %s117 = sphi 0, %s119
      %s120 = sphi 0, %s117
      %s121 = sphi 0, %s120
      %s137 = sphi 0, %s121
    $region4: #{fixup_basic_block.3} parent=1 // loop_header_branch
      %16 = sbr.rel (%p14) target = $region8
    $region5: #{fixup_basic_block.3} parent=1 // loop_body
      %s18 = ssub.s32 %s13, 1
      %s19 = ssub.s32 %s13, 2
      %s20 = sadd.s32 %s13, 1
      %s21 = ssub.s32 %s13, %s20
      %p22 = scmp.eq.s32.totalorder %s21, 0
      %s24 = sadd.s32 %s23, 1
      %s25 = scalar_select %p22, %s23, %s24
      %p28 = pneg %p22
      %p29 = scmp.eq.s32.totalorder %s13, 1
      %p30 = por %p28, %p29
      %p31 = scmp.ne.s32.totalorder %s23, %s26
      %p32 = scmp.eq.s32.totalorder %s13, 0
      %p33 = por %p31, %p32
      %p34 = scmp.ne.s32.totalorder %s23, %s26
      %p35 = scmp.eq.s32.totalorder %s18, 1
      %p36 = por %p34, %p35
      %p37 = scmp.ne.s32.totalorder %s26, %s27
      %p38 = scmp.eq.s32.totalorder %s18, 0
      %p39 = por %p37, %p38
      %p40 = scmp.ne.s32.totalorder %s26, %s27
      %p41 = scmp.eq.s32.totalorder %s19, 1
      %p42 = por %p40, %p41
      %p44 = scmp.ne.s32.totalorder %s27, %s43
      %p45 = scmp.eq.s32.totalorder %s19, 0
      %p46 = por %p44, %p45
      %s48 = sadd.s32 %s47, 1
      %p51 = scmp.eq.s32.totalorder %s13, 1
      %p52 = scmp.ne.s32.totalorder %s47, %s49
      %p53 = scmp.eq.s32.totalorder %s13, 0
      %p54 = por %p52, %p53
      %p55 = scmp.ne.s32.totalorder %s47, %s49
      %p56 = scmp.eq.s32.totalorder %s18, 1
      %p57 = por %p55, %p56
      %p58 = scmp.ne.s32.totalorder %s49, %s50
      %p59 = scmp.eq.s32.totalorder %s18, 0
      %p60 = por %p58, %p59
      %p61 = scmp.ne.s32.totalorder %s49, %s50
      %p62 = scmp.eq.s32.totalorder %s19, 1
      %p63 = por %p61, %p62
      %p65 = scmp.ne.s32.totalorder %s50, %s64
      %p66 = scmp.eq.s32.totalorder %s19, 0
      %p67 = por %p65, %p66
      %s69 = sadd.s32 %s68, 1
      %p72 = scmp.eq.s32.totalorder %s13, 1
      %p73 = scmp.ne.s32.totalorder %s68, %s70
      %p74 = scmp.eq.s32.totalorder %s13, 0
      %p75 = por %p73, %p74
      %p76 = scmp.ne.s32.totalorder %s68, %s70
      %p77 = scmp.eq.s32.totalorder %s18, 1
      %p78 = por %p76, %p77
      %p79 = scmp.ne.s32.totalorder %s70, %s71
      %p80 = scmp.eq.s32.totalorder %s18, 0
      %p81 = por %p79, %p80
      %p82 = scmp.ne.s32.totalorder %s70, %s71
      %p83 = scmp.eq.s32.totalorder %s19, 1
      %p84 = por %p82, %p83
      %p86 = scmp.ne.s32.totalorder %s71, %s85
      %p87 = scmp.eq.s32.totalorder %s19, 0
      %p88 = por %p86, %p87
      %s89 = ssub.s32 %s13, %s20
      %p90 = scmp.eq.s32.totalorder %s89, 0
      %s92 = sadd.s32 %s91, 1
      %s93 = scalar_select %p90, %s91, %s92
      %p96 = pneg %p90
      %p97 = scmp.eq.s32.totalorder %s13, 1
      %p98 = por %p96, %p97
      %p99 = scmp.ne.s32.totalorder %s91, %s94
      %p100 = scmp.eq.s32.totalorder %s13, 0
      %p101 = por %p99, %p100
      %p102 = scmp.ne.s32.totalorder %s91, %s94
      %p103 = scmp.eq.s32.totalorder %s18, 1
      %p104 = por %p102, %p103
      %p105 = scmp.ne.s32.totalorder %s94, %s95
      %p106 = scmp.eq.s32.totalorder %s18, 0
      %p107 = por %p105, %p106
      %p108 = scmp.ne.s32.totalorder %s94, %s95
      %p109 = scmp.eq.s32.totalorder %s19, 1
      %p110 = por %p108, %p109
      %p112 = scmp.ne.s32.totalorder %s95, %s111
      %p113 = scmp.eq.s32.totalorder %s19, 0
      %p114 = por %p112, %p113
      %s115 = ssub.s32 %s13, %s20
      %p116 = scmp.eq.s32.totalorder %s115, 0
      %s118 = sadd.s32 %s117, 1
      %s119 = scalar_select %p116, %s117, %s118
      %p122 = pneg %p116
      %p123 = scmp.eq.s32.totalorder %s13, 1
      %p124 = por %p122, %p123
      %p125 = scmp.ne.s32.totalorder %s117, %s120
      %p126 = scmp.eq.s32.totalorder %s13, 0
      %p127 = por %p125, %p126
      %p128 = scmp.ne.s32.totalorder %s117, %s120
      %p129 = scmp.eq.s32.totalorder %s18, 1
      %p130 = por %p128, %p129
      %p131 = scmp.ne.s32.totalorder %s120, %s121
      %p132 = scmp.eq.s32.totalorder %s18, 0
      %p133 = por %p131, %p132
      %p134 = scmp.ne.s32.totalorder %s120, %s121
      %p135 = scmp.eq.s32.totalorder %s19, 1
      %p136 = por %p134, %p135
      %p138 = scmp.ne.s32.totalorder %s121, %s137
      %p139 = scmp.eq.s32.totalorder %s19, 0
      %p140 = por %p138, %p139
      %p141 = scmp.le.s32.totalorder 1, %s13
      %p142 = scmp.lt.s32.totalorder %s13, 3
      %p143 = pnand %p141, %p142
      %p144 = pneg %p143
      // Predicated region
      $region9: #{fixup_basic_block.3} parent=5 // pred_check
        _
      $region10: #{fixup_basic_block.3} parent=5 // pred_check_branch
        %146 = sbr.rel (%p143) target = $region12
      $region11: #{fixup_basic_block.3} parent=5 // pred_region
        %s147 = ssub.s32 %s13, 1
        // Predicated region
        $region13: #{fixup_basic_block.3} parent=11 // pred_check
          %p148 = pneg %p60
        $region14: #{fixup_basic_block.3} parent=11 // pred_check_branch
          %150 = sbr.rel (%p148) target = $region16
        $region15: #{fixup_basic_block.3} parent=11 // pred_region
          _
        $region16: #{fixup_basic_block.3} parent=11 // pred_fallthru
          _
        // Predicated region
        $region17: #{fixup_basic_block.3} parent=11 // pred_check
          %p151 = pneg %p81
        $region18: #{fixup_basic_block.3} parent=11 // pred_check_branch
          %153 = sbr.rel (%p151) target = $region20
        $region19: #{fixup_basic_block.3} parent=11 // pred_region
          _
        $region20: #{fixup_basic_block.3} parent=11 // pred_fallthru
          _
      $region12: #{fixup_basic_block.3} parent=5 // pred_fallthru
        _
      %p154 = scmp.lt.s32.totalorder %s13, 2
      // Predicated region
      $region21: #{fixup_basic_block.3} parent=5 // pred_check
        %p155 = pneg %p154
      $region22: #{fixup_basic_block.3} parent=5 // pred_check_branch
        %157 = sbr.rel (%p155) target = $region24
      $region23: #{fixup_basic_block.3} parent=5 // pred_region
        // Predicated region
        $region25: #{fixup_basic_block.3} parent=23 // pred_check
          %p158 = pneg %p33
        $region26: #{fixup_basic_block.3} parent=23 // pred_check_branch
          %160 = sbr.rel (%p158) target = $region28
        $region27: #{fixup_basic_block.3} parent=23 // pred_region
          %s161 = smul.u32 32, %s13
          %p162 = scmp.lt.s32.totalorder %s161, 63
          %s163 = scalar_select %p162, %s161, 63
          %s164 = smul.addr %s163, 2
          %s165 = smul.addr %s164, 4
          %s166 = scalar_lea.vmem %s0, %s165
          %s167 = smul.u32 32, %s13
        $region28: #{fixup_basic_block.3} parent=23 // pred_fallthru
          _
        // Predicated region
        $region29: #{fixup_basic_block.3} parent=23 // pred_check
          %p168 = pneg %p101
        $region30: #{fixup_basic_block.3} parent=23 // pred_check_branch
          %170 = sbr.rel (%p168) target = $region32
        $region31: #{fixup_basic_block.3} parent=23 // pred_region
          %s171 = smul.u32 32, %s13
          %p172 = scmp.lt.s32.totalorder %s171, 63
          %s173 = scalar_select %p172, %s171, 63
          %s174 = smul.addr %s173, 8
          %s175 = scalar_lea.vmem %s3, %s174
          %s176 = smul.u32 32, %s13
        $region32: #{fixup_basic_block.3} parent=23 // pred_fallthru
          _
      $region24: #{fixup_basic_block.3} parent=5 // pred_fallthru
        _
      %p177 = scmp.le.s32.totalorder 1, %s13
      %p178 = scmp.lt.s32.totalorder %s13, 3
      %p179 = pnand %p177, %p178
      %p180 = pneg %p179
      // Predicated region
      $region33: #{fixup_basic_block.3} parent=5 // pred_check
        _
      $region34: #{fixup_basic_block.3} parent=5 // pred_check_branch
        %182 = sbr.rel (%p179) target = $region36
      $region35: #{fixup_basic_block.3} parent=5 // pred_region
        %s183 = ssub.s32 %s13, 1
        %s184 = smul.u32 32, %s18
        %p185 = scmp.lt.s32.totalorder %s184, 63
        %s186 = scalar_select %p185, %s184, 63
        %s187 = smul.addr %s186, 2
        %s188 = smul.addr %s187, 4
        %s189 = scalar_lea.vmem %s0, %s188
        %p190 = pneg %p39
        %p191 = pneg %p36
        %p192 = pneg %p60
        %p193 = pneg %p57
        %p194 = pneg %p81
        %p195 = pneg %p78
        %s196 = smul.u32 32, %s18
        %p197 = scmp.lt.s32.totalorder %s196, 63
        %s198 = scalar_select %p197, %s196, 63
        %s199 = smul.addr %s198, 8
        %s200 = scalar_lea.vmem %s3, %s199
        %p201 = pneg %p107
        %p202 = pneg %p104
        %p203 = pneg %p133
        %p204 = pneg %p130
        %s205 = sand.u32 %s120, 1
        %s206 = scalar_lea.sflag [#allocation3], %s205
        %s207 = sand.u32 %s120, 1
        %s208 = smul.addr %s207, 256
        %s209 = scalar_lea.vmem [#allocation2], %s208
        %s210 = smul.u32 32, %s18
        %p211 = scmp.lt.s32.totalorder %s210, 63
        %s212 = scalar_select %p211, %s210, 63
        %s213 = smul.addr %s212, 2
        %s214 = smul.addr %s213, 4
        %s215 = scalar_lea.vmem %s0, %s214
        %s216 = smul.u32 32, %s18
        %s217 = smul.u32 32, %s18
        %p218 = scmp.lt.s32.totalorder %s217, 63
        %s219 = scalar_select %p218, %s217, 63
        %s220 = smul.addr %s219, 8
        %s221 = scalar_lea.vmem %s3, %s220
        %s222 = smul.u32 32, %s18
        %s223 = smul.u32 32, %s18
        %v225 = vld [vmem:[%s215] sm:$0xff]
        %v226 = vld [vmem:[%s215 + $0x8] sm:$0xff]
        %v227 = vld [vmem:[%s215 + $0x10] sm:$0xff]
        %v228 = vld [vmem:[%s215 + $0x18] sm:$0xff]
        %v229 = vld [vmem:[%s215 + $0x20] sm:$0xff]
        %v230 = vld [vmem:[%s215 + $0x28] sm:$0xff]
        %v231 = vld [vmem:[%s215 + $0x30] sm:$0xff]
        %v232 = vld [vmem:[%s215 + $0x38] sm:$0xff]
        %v233 = vld [vmem:[%s215 + $0x40] sm:$0xff]
        %v234 = vld [vmem:[%s215 + $0x48] sm:$0xff]
        %v235 = vld [vmem:[%s215 + $0x50] sm:$0xff]
        %v236 = vld [vmem:[%s215 + $0x58] sm:$0xff]
        %v237 = vld [vmem:[%s215 + $0x60] sm:$0xff]
        %v238 = vld [vmem:[%s215 + $0x68] sm:$0xff]
        %v239 = vld [vmem:[%s215 + $0x70] sm:$0xff]
        %v240 = vld [vmem:[%s215 + $0x78] sm:$0xff]
        %v241 = vld [vmem:[%s215 + $0x80] sm:$0xff]
        %v242 = vld [vmem:[%s215 + $0x88] sm:$0xff]
        %v243 = vld [vmem:[%s215 + $0x90] sm:$0xff]
        %v244 = vld [vmem:[%s215 + $0x98] sm:$0xff]
        %v245 = vld [vmem:[%s215 + $0xa0] sm:$0xff]
        %v246 = vld [vmem:[%s215 + $0xa8] sm:$0xff]
        %v247 = vld [vmem:[%s215 + $0xb0] sm:$0xff]
        %v248 = vld [vmem:[%s215 + $0xb8] sm:$0xff]
        %v249 = vld [vmem:[%s215 + $0xc0] sm:$0xff]
        %v250 = vld [vmem:[%s215 + $0xc8] sm:$0xff]
        %v251 = vld [vmem:[%s215 + $0xd0] sm:$0xff]
        %v252 = vld [vmem:[%s215 + $0xd8] sm:$0xff]
        %v253 = vld [vmem:[%s215 + $0xe0] sm:$0xff]
        %v254 = vld [vmem:[%s215 + $0xe8] sm:$0xff]
        %v255 = vld [vmem:[%s215 + $0xf0] sm:$0xff]
        %v256 = vld [vmem:[%s215 + $0xf8] sm:$0xff]
        %v257 = vld [vmem:[%s1] sm:$0xf]
        %v258 = vld [vmem:[%s1 + $0x4] sm:$0xf]
        %v259 = vld [vmem:[%s1 + $0x8] sm:$0xf]
        %v260 = vld [vmem:[%s1 + $0xc] sm:$0xf]
        %v261 = vld [vmem:[%s1 + $0x10] sm:$0xf]
        %v262 = vld [vmem:[%s1 + $0x14] sm:$0xf]
        %v263 = vld [vmem:[%s1 + $0x18] sm:$0xf]
        %v264 = vld [vmem:[%s1 + $0x1c] sm:$0xf]
        %v265 = vld [vmem:[%s1 + $0x20] sm:$0xf]
        %v266 = vld [vmem:[%s1 + $0x24] sm:$0xf]
        %v267 = vld [vmem:[%s1 + $0x28] sm:$0xf]
        %v268 = vld [vmem:[%s1 + $0x2c] sm:$0xf]
        %v269 = vld [vmem:[%s1 + $0x30] sm:$0xf]
        %v270 = vld [vmem:[%s1 + $0x34] sm:$0xf]
        %v271 = vld [vmem:[%s1 + $0x38] sm:$0xf]
        %v272 = vld [vmem:[%s1 + $0x3c] sm:$0xf]
        %v273 = vld [vmem:[%s1 + $0x40] sm:$0xf]
        %v274 = vld [vmem:[%s1 + $0x44] sm:$0xf]
        %v275 = vld [vmem:[%s2] sm:$0x1]
        %v277 = vlaneseq
        %v278 = vshrl.u32 %v277, 7
        %v279 = vsub.s32 0, %v278
        %v280 = vrot.slane %v275, %v279
        %v314 = vunpack.c.l.b16 %v225
        %v315 = vunpack.c.h.b16 %v225
        %v316 = vunpack.c.l.b16 %v226
        %v317 = vunpack.c.h.b16 %v226
        %v318 = vunpack.c.l.b16 %v227
        %v319 = vunpack.c.h.b16 %v227
        %v320 = vunpack.c.l.b16 %v228
        %v321 = vunpack.c.h.b16 %v228
        %v322 = vunpack.c.l.b16 %v229
        %v323 = vunpack.c.h.b16 %v229
        %v324 = vunpack.c.l.b16 %v230
        %v325 = vunpack.c.h.b16 %v230
        %v326 = vunpack.c.l.b16 %v231
        %v327 = vunpack.c.h.b16 %v231
        %v328 = vunpack.c.l.b16 %v232
        %v329 = vunpack.c.h.b16 %v232
        %v330 = vunpack.c.l.b16 %v233
        %v331 = vunpack.c.h.b16 %v233
        %v332 = vunpack.c.l.b16 %v234
        %v333 = vunpack.c.h.b16 %v234
        %v334 = vunpack.c.l.b16 %v235
        %v335 = vunpack.c.h.b16 %v235
        %v336 = vunpack.c.l.b16 %v236
        %v337 = vunpack.c.h.b16 %v236
        %v338 = vunpack.c.l.b16 %v237
        %v339 = vunpack.c.h.b16 %v237
        %v340 = vunpack.c.l.b16 %v238
        %v341 = vunpack.c.h.b16 %v238
        %v342 = vunpack.c.l.b16 %v239
        %v343 = vunpack.c.h.b16 %v239
        %v344 = vunpack.c.l.b16 %v240
        %v345 = vunpack.c.h.b16 %v240
        %v346 = vunpack.c.l.b16 %v241
        %v347 = vunpack.c.h.b16 %v241
        %v348 = vunpack.c.l.b16 %v242
        %v349 = vunpack.c.h.b16 %v242
        %v350 = vunpack.c.l.b16 %v243
        %v351 = vunpack.c.h.b16 %v243
        %v352 = vunpack.c.l.b16 %v244
        %v353 = vunpack.c.h.b16 %v244
        %v354 = vunpack.c.l.b16 %v245
        %v355 = vunpack.c.h.b16 %v245
        %v356 = vunpack.c.l.b16 %v246
        %v357 = vunpack.c.h.b16 %v246
        %v358 = vunpack.c.l.b16 %v247
        %v359 = vunpack.c.h.b16 %v247
        %v360 = vunpack.c.l.b16 %v248
        %v361 = vunpack.c.h.b16 %v248
        %v362 = vunpack.c.l.b16 %v249
        %v363 = vunpack.c.h.b16 %v249
        %v364 = vunpack.c.l.b16 %v250
        %v365 = vunpack.c.h.b16 %v250
        %v366 = vunpack.c.l.b16 %v251
        %v367 = vunpack.c.h.b16 %v251
        %v368 = vunpack.c.l.b16 %v252
        %v369 = vunpack.c.h.b16 %v252
        %v370 = vunpack.c.l.b16 %v253
        %v371 = vunpack.c.h.b16 %v253
        %v372 = vunpack.c.l.b16 %v254
        %v373 = vunpack.c.h.b16 %v254
        %v374 = vunpack.c.l.b16 %v255
        %v375 = vunpack.c.h.b16 %v255
        %v376 = vunpack.c.l.b16 %v256
        %v377 = vunpack.c.h.b16 %v256
        %v378 = vpack.c.b16 %v316, %v314
        %v379 = vpack.c.b16 %v317, %v315
        %v380 = vpack.c.b16 %v320, %v318
        %v381 = vpack.c.b16 %v321, %v319
        %v382 = vpack.c.b16 %v324, %v322
        %v383 = vpack.c.b16 %v325, %v323
        %v384 = vpack.c.b16 %v328, %v326
        %v385 = vpack.c.b16 %v329, %v327
        %v386 = vpack.c.b16 %v332, %v330
        %v387 = vpack.c.b16 %v333, %v331
        %v388 = vpack.c.b16 %v336, %v334
        %v389 = vpack.c.b16 %v337, %v335
        %v390 = vpack.c.b16 %v340, %v338
        %v391 = vpack.c.b16 %v341, %v339
        %v392 = vpack.c.b16 %v344, %v342
        %v393 = vpack.c.b16 %v345, %v343
        %v394 = vpack.c.b16 %v348, %v346
        %v395 = vpack.c.b16 %v349, %v347
        %v396 = vpack.c.b16 %v352, %v350
        %v397 = vpack.c.b16 %v353, %v351
        %v398 = vpack.c.b16 %v356, %v354
        %v399 = vpack.c.b16 %v357, %v355
        %v400 = vpack.c.b16 %v360, %v358
        %v401 = vpack.c.b16 %v361, %v359
        %v402 = vpack.c.b16 %v364, %v362
        %v403 = vpack.c.b16 %v365, %v363
        %v404 = vpack.c.b16 %v368, %v366
        %v405 = vpack.c.b16 %v369, %v367
        %v406 = vpack.c.b16 %v372, %v370
        %v407 = vpack.c.b16 %v373, %v371
        %v408 = vpack.c.b16 %v376, %v374
        %v409 = vpack.c.b16 %v377, %v375
        %v444 = vunpack.c.l.b16 %v257
        %v445 = vunpack.c.l.b16 %v258
        %v446 = vunpack.c.l.b16 %v259
        %v447 = vunpack.c.l.b16 %v260
        %v448 = vunpack.c.l.b16 %v261
        %v449 = vunpack.c.l.b16 %v262
        %v450 = vunpack.c.l.b16 %v263
        %v451 = vunpack.c.l.b16 %v264
        %v452 = vunpack.c.l.b16 %v265
        %v453 = vunpack.c.l.b16 %v266
        %v454 = vunpack.c.l.b16 %v267
        %v455 = vunpack.c.l.b16 %v268
        %v456 = vunpack.c.l.b16 %v269
        %v457 = vunpack.c.l.b16 %v270
        %v458 = vunpack.c.l.b16 %v271
        %v459 = vunpack.c.l.b16 %v272
        %v460 = vunpack.c.l.b16 %v273
        %v461 = vunpack.c.l.b16 %v274
        %v462 = vpack.c.b16 %v445, %v444
        %v463 = vpack.c.b16 %v447, %v446
        %v464 = vpack.c.b16 %v449, %v448
        %v465 = vpack.c.b16 %v451, %v450
        %v466 = vpack.c.b16 %v453, %v452
        %v467 = vpack.c.b16 %v455, %v454
        %v468 = vpack.c.b16 %v457, %v456
        %v469 = vpack.c.b16 %v459, %v458
        %v470 = vpack.c.b16 %v461, %v460
        %vm480 = vcmask 130048
        %v482 = vsel %vm480, %v379, 0
        %v485 = vsel %vm480, %v381, 0
        %v488 = vsel %vm480, %v383, 0
        %v491 = vsel %vm480, %v385, 0
        %v494 = vsel %vm480, %v387, 0
        %v497 = vsel %vm480, %v389, 0
        %v500 = vsel %vm480, %v391, 0
        %v503 = vsel %vm480, %v393, 0
        %v506 = vsel %vm480, %v395, 0
        %v509 = vsel %vm480, %v397, 0
        %v512 = vsel %vm480, %v399, 0
        %v515 = vsel %vm480, %v401, 0
        %v518 = vsel %vm480, %v403, 0
        %v521 = vsel %vm480, %v405, 0
        %v524 = vsel %vm480, %v407, 0
        %v527 = vsel %vm480, %v409, 0
        %529 = vmatprep.subr.bf16.mxu0 0
        %530 = vmatpush1.bf16.msra.mxu0 %v462
        %531 = vmatprep.subr.bf16.mxu0 0
        %532 = vmatpush1.bf16.msra.mxu0 %v463
        %533 = vmatprep.subr.bf16.mxu0 0
        %534 = vmatpush1.bf16.msra.mxu0 %v464
        %535 = vmatprep.subr.bf16.mxu0 0
        %536 = vmatpush1.bf16.msra.mxu0 %v465
        %537 = vmatprep.subr.bf16.mxu0 0
        %538 = vmatpush1.bf16.msra.mxu0 %v466
        %539 = vmatprep.subr.bf16.mxu0 0
        %540 = vmatpush1.bf16.msra.mxu0 %v467
        %541 = vmatprep.subr.bf16.mxu0 0
        %542 = vmatpush1.bf16.msra.mxu0 %v468
        %543 = vmatprep.subr.bf16.mxu0 0
        %544 = vmatpush1.bf16.msra.mxu0 %v469
        %545 = vmatprep.subr.bf16.mxu0 0
        %546 = vmatpush1.bf16.msra.mxu0 %v470
        %547 = vmatprep.subr.bf16.mxu0 0
        %548 = vmatpush1.bf16.msra.mxu0 0
        %549 = vmatprep.subr.bf16.mxu0 0
        %550 = vmatpush1.bf16.msra.mxu0 0
        %551 = vmatprep.subr.bf16.mxu0 0
        %552 = vmatpush1.bf16.msra.mxu0 0
        %553 = vmatprep.subr.bf16.mxu0 0
        %554 = vmatpush1.bf16.msra.mxu0 0
        %555 = vmatprep.subr.bf16.mxu0 0
        %556 = vmatpush1.bf16.msra.mxu0 0
        %557 = vmatprep.subr.bf16.mxu0 0
        %558 = vmatpush1.bf16.msra.mxu0 0
        %559 = vmatprep.subr.bf16.mxu0 0
        %560 = vmatpush1.bf16.msra.mxu0 0
        %561 = vmatprep.mubr.bf16.mxu0 %v482
        %562 = vmatmul.mubr.bf16.gmra.mrb[0].mxu0 %v378
        %v563 = vpop.f32.mrb[0].mxu0
        %v564 = vadd.f32 %v280, %v563
        %v565 = vpop.f32.mrb[0].mxu0
        %v566 = vpop.f32.mrb[0].mxu0
        %v567 = vadd.f32 %v280, %v566
        %v568 = vpop.f32.mrb[0].mxu0
        %569 = vmatprep.mubr.bf16.mxu0 %v485
        %570 = vmatmul.mubr.bf16.gmra.mrb[0].mxu0 %v380
        %v571 = vpop.f32.mrb[0].mxu0
        %v572 = vadd.f32 %v280, %v571
        %v573 = vpop.f32.mrb[0].mxu0
        %v574 = vpop.f32.mrb[0].mxu0
        %v575 = vadd.f32 %v280, %v574
        %v576 = vpop.f32.mrb[0].mxu0
        %577 = vmatprep.mubr.bf16.mxu0 %v488
        %578 = vmatmul.mubr.bf16.gmra.mrb[0].mxu0 %v382
        %v579 = vpop.f32.mrb[0].mxu0
        %v580 = vadd.f32 %v280, %v579
        %v581 = vpop.f32.mrb[0].mxu0
        %v582 = vpop.f32.mrb[0].mxu0
        %v583 = vadd.f32 %v280, %v582
        %v584 = vpop.f32.mrb[0].mxu0
        %585 = vmatprep.mubr.bf16.mxu0 %v491
        %586 = vmatmul.mubr.bf16.gmra.mrb[0].mxu0 %v384
        %v587 = vpop.f32.mrb[0].mxu0
        %v588 = vadd.f32 %v280, %v587
        %v589 = vpop.f32.mrb[0].mxu0
        %v590 = vpop.f32.mrb[0].mxu0
        %v591 = vadd.f32 %v280, %v590
        %v592 = vpop.f32.mrb[0].mxu0
        %593 = vmatprep.mubr.bf16.mxu0 %v494
        %594 = vmatmul.mubr.bf16.gmra.mrb[0].mxu0 %v386
        %v595 = vpop.f32.mrb[0].mxu0
        %v596 = vadd.f32 %v280, %v595
        %v597 = vpop.f32.mrb[0].mxu0
        %v598 = vpop.f32.mrb[0].mxu0
        %v599 = vadd.f32 %v280, %v598
        %v600 = vpop.f32.mrb[0].mxu0
        %601 = vmatprep.mubr.bf16.mxu0 %v497
        %602 = vmatmul.mubr.bf16.gmra.mrb[0].mxu0 %v388
        %v603 = vpop.f32.mrb[0].mxu0
        %v604 = vadd.f32 %v280, %v603
        %v605 = vpop.f32.mrb[0].mxu0
        %v606 = vpop.f32.mrb[0].mxu0
        %v607 = vadd.f32 %v280, %v606
        %v608 = vpop.f32.mrb[0].mxu0
        %609 = vmatprep.mubr.bf16.mxu0 %v500
        %610 = vmatmul.mubr.bf16.gmra.mrb[0].mxu0 %v390
        %v611 = vpop.f32.mrb[0].mxu0
        %v612 = vadd.f32 %v280, %v611
        %v613 = vpop.f32.mrb[0].mxu0
        %v614 = vpop.f32.mrb[0].mxu0
        %v615 = vadd.f32 %v280, %v614
        %v616 = vpop.f32.mrb[0].mxu0
        %617 = vmatprep.mubr.bf16.mxu0 %v503
        %618 = vmatmul.mubr.bf16.gmra.mrb[0].mxu0 %v392
        %v619 = vpop.f32.mrb[0].mxu0
        %v620 = vadd.f32 %v280, %v619
        %v621 = vpop.f32.mrb[0].mxu0
        %v622 = vpop.f32.mrb[0].mxu0
        %v623 = vadd.f32 %v280, %v622
        %v624 = vpop.f32.mrb[0].mxu0
        %625 = vmatprep.mubr.bf16.mxu0 %v506
        %626 = vmatmul.mubr.bf16.gmra.mrb[0].mxu0 %v394
        %v627 = vpop.f32.mrb[0].mxu0
        %v628 = vadd.f32 %v280, %v627
        %v629 = vpop.f32.mrb[0].mxu0
        %v630 = vpop.f32.mrb[0].mxu0
        %v631 = vadd.f32 %v280, %v630
        %v632 = vpop.f32.mrb[0].mxu0
        %633 = vmatprep.mubr.bf16.mxu0 %v509
        %634 = vmatmul.mubr.bf16.gmra.mrb[0].mxu0 %v396
        %v635 = vpop.f32.mrb[0].mxu0
        %v636 = vadd.f32 %v280, %v635
        %v637 = vpop.f32.mrb[0].mxu0
        %v638 = vpop.f32.mrb[0].mxu0
        %v639 = vadd.f32 %v280, %v638
        %v640 = vpop.f32.mrb[0].mxu0
        %641 = vmatprep.mubr.bf16.mxu0 %v512
        %642 = vmatmul.mubr.bf16.gmra.mrb[0].mxu0 %v398
        %v643 = vpop.f32.mrb[0].mxu0
        %v644 = vadd.f32 %v280, %v643
        %v645 = vpop.f32.mrb[0].mxu0
        %v646 = vpop.f32.mrb[0].mxu0
        %v647 = vadd.f32 %v280, %v646
        %v648 = vpop.f32.mrb[0].mxu0
        %649 = vmatprep.mubr.bf16.mxu0 %v515
        %650 = vmatmul.mubr.bf16.gmra.mrb[0].mxu0 %v400
        %v651 = vpop.f32.mrb[0].mxu0
        %v652 = vadd.f32 %v280, %v651
        %v653 = vpop.f32.mrb[0].mxu0
        %v654 = vpop.f32.mrb[0].mxu0
        %v655 = vadd.f32 %v280, %v654
        %v656 = vpop.f32.mrb[0].mxu0
        %657 = vmatprep.mubr.bf16.mxu0 %v518
        %658 = vmatmul.mubr.bf16.gmra.mrb[0].mxu0 %v402
        %v659 = vpop.f32.mrb[0].mxu0
        %v660 = vadd.f32 %v280, %v659
        %v661 = vpop.f32.mrb[0].mxu0
        %v662 = vpop.f32.mrb[0].mxu0
        %v663 = vadd.f32 %v280, %v662
        %v664 = vpop.f32.mrb[0].mxu0
        %665 = vmatprep.mubr.bf16.mxu0 %v521
        %666 = vmatmul.mubr.bf16.gmra.mrb[0].mxu0 %v404
        %v667 = vpop.f32.mrb[0].mxu0
        %v668 = vadd.f32 %v280, %v667
        %v669 = vpop.f32.mrb[0].mxu0
        %v670 = vpop.f32.mrb[0].mxu0
        %v671 = vadd.f32 %v280, %v670
        %v672 = vpop.f32.mrb[0].mxu0
        %673 = vmatprep.mubr.bf16.mxu0 %v524
        %674 = vmatmul.mubr.bf16.gmra.mrb[0].mxu0 %v406
        %v675 = vpop.f32.mrb[0].mxu0
        %v676 = vadd.f32 %v280, %v675
        %v677 = vpop.f32.mrb[0].mxu0
        %v678 = vpop.f32.mrb[0].mxu0
        %v679 = vadd.f32 %v280, %v678
        %v680 = vpop.f32.mrb[0].mxu0
        %681 = vmatprep.mubr.bf16.mxu0 %v527
        %682 = vmatmul.mubr.bf16.gmra.mrb[0].mxu0 %v408
        %v683 = vpop.f32.mrb[0].mxu0
        %v684 = vadd.f32 %v280, %v683
        %v685 = vpop.f32.mrb[0].mxu0
        %v686 = vpop.f32.mrb[0].mxu0
        %v687 = vadd.f32 %v280, %v686
        %v688 = vpop.f32.mrb[0].mxu0
        %689 = vdwg.mxu0
        %v690 = vld [vmem:[%s221] sm:$0xff]
        %v691 = vld [vmem:[%s221 + $0x8] sm:$0xff]
        %v692 = vld [vmem:[%s221 + $0x10] sm:$0xff]
        %v693 = vld [vmem:[%s221 + $0x18] sm:$0xff]
        %v694 = vld [vmem:[%s221 + $0x20] sm:$0xff]
        %v695 = vld [vmem:[%s221 + $0x28] sm:$0xff]
        %v696 = vld [vmem:[%s221 + $0x30] sm:$0xff]
        %v697 = vld [vmem:[%s221 + $0x38] sm:$0xff]
        %v698 = vld [vmem:[%s221 + $0x40] sm:$0xff]
        %v699 = vld [vmem:[%s221 + $0x48] sm:$0xff]
        %v700 = vld [vmem:[%s221 + $0x50] sm:$0xff]
        %v701 = vld [vmem:[%s221 + $0x58] sm:$0xff]
        %v702 = vld [vmem:[%s221 + $0x60] sm:$0xff]
        %v703 = vld [vmem:[%s221 + $0x68] sm:$0xff]
        %v704 = vld [vmem:[%s221 + $0x70] sm:$0xff]
        %v705 = vld [vmem:[%s221 + $0x78] sm:$0xff]
        %v706 = vld [vmem:[%s221 + $0x80] sm:$0xff]
        %v707 = vld [vmem:[%s221 + $0x88] sm:$0xff]
        %v708 = vld [vmem:[%s221 + $0x90] sm:$0xff]
        %v709 = vld [vmem:[%s221 + $0x98] sm:$0xff]
        %v710 = vld [vmem:[%s221 + $0xa0] sm:$0xff]
        %v711 = vld [vmem:[%s221 + $0xa8] sm:$0xff]
        %v712 = vld [vmem:[%s221 + $0xb0] sm:$0xff]
        %v713 = vld [vmem:[%s221 + $0xb8] sm:$0xff]
        %v714 = vld [vmem:[%s221 + $0xc0] sm:$0xff]
        %v715 = vld [vmem:[%s221 + $0xc8] sm:$0xff]
        %v716 = vld [vmem:[%s221 + $0xd0] sm:$0xff]
        %v717 = vld [vmem:[%s221 + $0xd8] sm:$0xff]
        %v718 = vld [vmem:[%s221 + $0xe0] sm:$0xff]
        %v719 = vld [vmem:[%s221 + $0xe8] sm:$0xff]
        %v720 = vld [vmem:[%s221 + $0xf0] sm:$0xff]
        %v721 = vld [vmem:[%s221 + $0xf8] sm:$0xff]
        %v722 = vadd.f32 %v564, %v690
        %v723 = vadd.f32 %v567, %v691
        %v724 = vadd.f32 %v572, %v692
        %v725 = vadd.f32 %v575, %v693
        %v726 = vadd.f32 %v580, %v694
        %v727 = vadd.f32 %v583, %v695
        %v728 = vadd.f32 %v588, %v696
        %v729 = vadd.f32 %v591, %v697
        %v730 = vadd.f32 %v596, %v698
        %v731 = vadd.f32 %v599, %v699
        %v732 = vadd.f32 %v604, %v700
        %v733 = vadd.f32 %v607, %v701
        %v734 = vadd.f32 %v612, %v702
        %v735 = vadd.f32 %v615, %v703
        %v736 = vadd.f32 %v620, %v704
        %v737 = vadd.f32 %v623, %v705
        %v738 = vadd.f32 %v628, %v706
        %v739 = vadd.f32 %v631, %v707
        %v740 = vadd.f32 %v636, %v708
        %v741 = vadd.f32 %v639, %v709
        %v742 = vadd.f32 %v644, %v710
        %v743 = vadd.f32 %v647, %v711
        %v744 = vadd.f32 %v652, %v712
        %v745 = vadd.f32 %v655, %v713
        %v746 = vadd.f32 %v660, %v714
        %v747 = vadd.f32 %v663, %v715
        %v748 = vadd.f32 %v668, %v716
        %v749 = vadd.f32 %v671, %v717
        %v750 = vadd.f32 %v676, %v718
        %v751 = vadd.f32 %v679, %v719
        %v752 = vadd.f32 %v684, %v720
        %v753 = vadd.f32 %v687, %v721
        %v754 = vmax.f32 %v722, 0.0
        %v755 = vmax.f32 %v723, 0.0
        %v756 = vmax.f32 %v724, 0.0
        %v757 = vmax.f32 %v725, 0.0
        %v758 = vmax.f32 %v726, 0.0
        %v759 = vmax.f32 %v727, 0.0
        %v760 = vmax.f32 %v728, 0.0
        %v761 = vmax.f32 %v729, 0.0
        %v762 = vmax.f32 %v730, 0.0
        %v763 = vmax.f32 %v731, 0.0
        %v764 = vmax.f32 %v732, 0.0
        %v765 = vmax.f32 %v733, 0.0
        %v766 = vmax.f32 %v734, 0.0
        %v767 = vmax.f32 %v735, 0.0
        %v768 = vmax.f32 %v736, 0.0
        %v769 = vmax.f32 %v737, 0.0
        %v770 = vmax.f32 %v738, 0.0
        %v771 = vmax.f32 %v739, 0.0
        %v772 = vmax.f32 %v740, 0.0
        %v773 = vmax.f32 %v741, 0.0
        %v774 = vmax.f32 %v742, 0.0
        %v775 = vmax.f32 %v743, 0.0
        %v776 = vmax.f32 %v744, 0.0
        %v777 = vmax.f32 %v745, 0.0
        %v778 = vmax.f32 %v746, 0.0
        %v779 = vmax.f32 %v747, 0.0
        %v780 = vmax.f32 %v748, 0.0
        %v781 = vmax.f32 %v749, 0.0
        %v782 = vmax.f32 %v750, 0.0
        %v783 = vmax.f32 %v751, 0.0
        %v784 = vmax.f32 %v752, 0.0
        %v785 = vmax.f32 %v753, 0.0
        %786 = vst [vmem:[%s209] sm:$0xff] %v754
        %787 = vst [vmem:[%s209 + $0x8] sm:$0xff] %v755
        %788 = vst [vmem:[%s209 + $0x10] sm:$0xff] %v756
        %789 = vst [vmem:[%s209 + $0x18] sm:$0xff] %v757
        %790 = vst [vmem:[%s209 + $0x20] sm:$0xff] %v758
        %791 = vst [vmem:[%s209 + $0x28] sm:$0xff] %v759
        %792 = vst [vmem:[%s209 + $0x30] sm:$0xff] %v760
        %793 = vst [vmem:[%s209 + $0x38] sm:$0xff] %v761
        %794 = vst [vmem:[%s209 + $0x40] sm:$0xff] %v762
        %795 = vst [vmem:[%s209 + $0x48] sm:$0xff] %v763
        %796 = vst [vmem:[%s209 + $0x50] sm:$0xff] %v764
        %797 = vst [vmem:[%s209 + $0x58] sm:$0xff] %v765
        %798 = vst [vmem:[%s209 + $0x60] sm:$0xff] %v766
        %799 = vst [vmem:[%s209 + $0x68] sm:$0xff] %v767
        %800 = vst [vmem:[%s209 + $0x70] sm:$0xff] %v768
        %801 = vst [vmem:[%s209 + $0x78] sm:$0xff] %v769
        %802 = vst [vmem:[%s209 + $0x80] sm:$0xff] %v770
        %803 = vst [vmem:[%s209 + $0x88] sm:$0xff] %v771
        %804 = vst [vmem:[%s209 + $0x90] sm:$0xff] %v772
        %805 = vst [vmem:[%s209 + $0x98] sm:$0xff] %v773
        %806 = vst [vmem:[%s209 + $0xa0] sm:$0xff] %v774
        %807 = vst [vmem:[%s209 + $0xa8] sm:$0xff] %v775
        %808 = vst [vmem:[%s209 + $0xb0] sm:$0xff] %v776
        %809 = vst [vmem:[%s209 + $0xb8] sm:$0xff] %v777
        %810 = vst [vmem:[%s209 + $0xc0] sm:$0xff] %v778
        %811 = vst [vmem:[%s209 + $0xc8] sm:$0xff] %v779
        %812 = vst [vmem:[%s209 + $0xd0] sm:$0xff] %v780
        %813 = vst [vmem:[%s209 + $0xd8] sm:$0xff] %v781
        %814 = vst [vmem:[%s209 + $0xe0] sm:$0xff] %v782
        %815 = vst [vmem:[%s209 + $0xe8] sm:$0xff] %v783
        %816 = vst [vmem:[%s209 + $0xf0] sm:$0xff] %v784
        %817 = vst [vmem:[%s209 + $0xf8] sm:$0xff] %v785
        %s818 = sand.u32 %s120, 1
        %s819 = scalar_lea.sflag [#allocation3], %s818
        %s820 = sand.u32 %s120, 1
        %s821 = smul.addr %s820, 256
        %s822 = scalar_lea.vmem [#allocation2], %s821
        // Predicated region
        $region37: #{fixup_basic_block.3} parent=35 // pred_check
          %p823 = pneg %p130
        $region38: #{fixup_basic_block.3} parent=35 // pred_check_branch
          %825 = sbr.rel (%p823) target = $region40
        $region39: #{fixup_basic_block.3} parent=35 // pred_region
          %s826 = smul.u32 32, %s18
          %s828 = ssub.s32 4096, 4096
          %829 = vsyncadd %s819, %s828
          %s830 = smul.addr %s826, 128
          %s831 = scalar_lea.hbm %s4, %s830
          %s832 = sshll.u32 %s822, 4
          %s833 = int_to_ptr.vmem [resolvable:$true] %s832
          %838 = dma.vmem_to_hbm [thread:$0]  %s833, 4096, %s831, %s819, 128, 128, 8
        $region40: #{fixup_basic_block.3} parent=35 // pred_fallthru
          _
      $region36: #{fixup_basic_block.3} parent=5 // pred_fallthru
        _
      %p839 = scmp.le.s32.totalorder 2, %s13
      // Predicated region
      $region41: #{fixup_basic_block.3} parent=5 // pred_check
        %p840 = pneg %p839
      $region42: #{fixup_basic_block.3} parent=5 // pred_check_branch
        %842 = sbr.rel (%p840) target = $region44
      $region43: #{fixup_basic_block.3} parent=5 // pred_region
        %s843 = ssub.s32 %s13, 2
        // Predicated region
        $region45: #{fixup_basic_block.3} parent=43 // pred_check
          %p844 = pneg %p136
        $region46: #{fixup_basic_block.3} parent=43 // pred_check_branch
          %846 = sbr.rel (%p844) target = $region48
        $region47: #{fixup_basic_block.3} parent=43 // pred_region
          %s847 = sand.u32 %s121, 1
          %s848 = scalar_lea.sflag [#allocation3], %s847
          %s849 = sand.u32 %s121, 1
          %s850 = smul.addr %s849, 256
          %s851 = scalar_lea.vmem [#allocation2], %s850
          %852 = dma.done %s848, 4096
        $region48: #{fixup_basic_block.3} parent=43 // pred_fallthru
          _
      $region44: #{fixup_basic_block.3} parent=5 // pred_fallthru
        _
    $region6: #{fixup_basic_block.3} parent=1 // loop_footer
      %s17 = sadd.s32 1, %s13
    $region7: #{fixup_basic_block.3} parent=1 // loop_footer_branch
      %12 = sbr.rel target = $region3
    $region8: #{fixup_basic_block.3} parent=1 // loop_exit
      _
    %853 = vsyncpa [#allocation3], 1
    %s854 = scalar_lea.sflag [#allocation3], 1
    %855 = vsyncpa %s854, 1

</llo_original>
